<compile_context>
chip_gen: v7x
topology: tpu7x:2x2x1
jax: 0.10.0
libtpu: 0.0.40
codegen_flags: <defaults>
</compile_context>

<pallas_src>
import math
from functools import partial

import jax
import jax.numpy as jnp
from jax import lax
from jax.experimental import pallas as pl
from jax.experimental.pallas import tpu as pltpu


def _round_up(x, m):
    return ((x + m - 1) // m) * m


def _cparams(*sem):
    return pltpu.CompilerParams(dimension_semantics=sem,
                                vmem_limit_bytes=32 * 1024 * 1024)


# ----------------------------- tiled matmul (MXU) ----------------------------

def _mm_bias_kernel(x_ref, w_ref, b_ref, o_ref, acc_ref):
    @pl.when(pl.program_id(2) == 0)
    def _():
        acc_ref[...] = jnp.zeros_like(acc_ref)

    acc_ref[...] += jnp.dot(x_ref[...], w_ref[...],
                            preferred_element_type=jnp.float32)

    @pl.when(pl.program_id(2) == pl.num_programs(2) - 1)
    def _():
        o_ref[...] = acc_ref[...] + b_ref[...]


def _mm_kernel(x_ref, w_ref, o_ref, acc_ref):
    @pl.when(pl.program_id(2) == 0)
    def _():
        acc_ref[...] = jnp.zeros_like(acc_ref)

    acc_ref[...] += jnp.dot(x_ref[...], w_ref[...],
                            preferred_element_type=jnp.float32)

    @pl.when(pl.program_id(2) == pl.num_programs(2) - 1)
    def _():
        o_ref[...] = acc_ref[...]


def _tiled_matmul(x, w, b):
    M, K = x.shape
    N = w.shape[1]
    tm = min(512, _round_up(M, 8))      # bigger row tiles for tall-skinny GEMMs
    tn = min(256, _round_up(N, 128))
    tk = min(512, _round_up(K, 128))
    Mp, Np, Kp = _round_up(M, tm), _round_up(N, tn), _round_up(K, tk)
    xp = jnp.pad(x.astype(jnp.bfloat16), ((0, Mp - M), (0, Kp - K)))
    wp = jnp.pad(w.astype(jnp.bfloat16), ((0, Kp - K), (0, Np - N)))

    in_specs = [pl.BlockSpec((tm, tk), lambda i, j, k: (i, k)),
                pl.BlockSpec((tk, tn), lambda i, j, k: (k, j))]
    args = [xp, wp]
    if b is not None:
        bp = jnp.pad(b.reshape(1, N).astype(jnp.float32), ((0, 0), (0, Np - N)))
        in_specs.append(pl.BlockSpec((1, tn), lambda i, j, k: (0, j)))
        args.append(bp)
        kernel = _mm_bias_kernel
    else:
        kernel = _mm_kernel

    cost = pl.CostEstimate(flops=2 * Mp * Np * Kp, transcendentals=0,
                           bytes_accessed=2 * (Mp * Kp + Kp * Np) + 4 * Mp * Np)
    out = pl.pallas_call(
        kernel,
        grid=(Mp // tm, Np // tn, Kp // tk),
        in_specs=in_specs,
        out_specs=pl.BlockSpec((tm, tn), lambda i, j, k: (i, j)),
        out_shape=jax.ShapeDtypeStruct((Mp, Np), jnp.float32),
        scratch_shapes=[pltpu.VMEM((tm, tn), jnp.float32)],
        compiler_params=_cparams("parallel", "parallel", "arbitrary"),
        cost_estimate=cost,
    )(*args)
    return out[:M, :N]


@jax.jit
def _matmul_bias(x, w, b):
    return _tiled_matmul(x, w, b)


@jax.jit
def _matmul_nobias(x, w):
    return _tiled_matmul(x, w, None)


def matmul(x, w, b=None):
    if b is None:
        return _matmul_nobias(x, w)
    return _matmul_bias(x, w, b)


# ------------------- grouped matmul for SS2D projections ---------------------

def _bmm_kernel(x_ref, w_ref, o_ref):
    o_ref[...] = jnp.dot(x_ref[...], w_ref[...],
                         preferred_element_type=jnp.float32).astype(o_ref.dtype)


@partial(jax.jit, static_argnames=("out_dtype",))
def pallas_bmm(x, w, out_dtype=jnp.float32):
    # x: (G, M, Kd), w: (G, Kd, N) -> (G, M, N).  Output N padded to 128 lanes
    # inside (lane-dense unmasked stores), sliced back before returning.
    G, M, Kd = x.shape
    N = w.shape[2]
    Np = _round_up(N, 128)
    tm = min(512, _round_up(M, 8))
    Mp = _round_up(M, tm)
    xp = jnp.pad(x.astype(jnp.bfloat16), ((0, 0), (0, Mp - M), (0, 0)))
    wp = jnp.pad(w.astype(jnp.bfloat16), ((0, 0), (0, 0), (0, Np - N)))
    out = pl.pallas_call(
        _bmm_kernel,
        grid=(G, Mp // tm),
        in_specs=[pl.BlockSpec((None, tm, Kd), lambda g, m: (g, m, 0)),
                  pl.BlockSpec((None, Kd, Np), lambda g, m: (g, 0, 0))],
        out_specs=pl.BlockSpec((None, tm, Np), lambda g, m: (g, m, 0)),
        out_shape=jax.ShapeDtypeStruct((G, Mp, Np), out_dtype),
        compiler_params=_cparams("parallel", "parallel"),
    )(xp, wp)
    return out[:, :M, :N]


# ------------------------------- LayerNorm ------------------------------------

def _ln_kernel(x_ref, w_ref, b_ref, o_ref):
    x = x_ref[...]
    mu = jnp.mean(x, axis=-1, keepdims=True)
    var = jnp.mean(jnp.square(x - mu), axis=-1, keepdims=True)
    o_ref[...] = (x - mu) * lax.rsqrt(var + 1e-5) * w_ref[...] + b_ref[...]


@jax.jit
def pallas_layernorm(x2d, w, b):
    # TODO(synk): when C < 128 the output store is lane-masked; packing two rows
    # per vreg would make it lane-dense.
    R, C = x2d.shape
    tr = min(512, _round_up(R, 8))
    Rp = _round_up(R, tr)
    xp = jnp.pad(x2d.astype(jnp.float32), ((0, Rp - R), (0, 0)))
    out = pl.pallas_call(
        _ln_kernel,
        grid=(Rp // tr,),
        in_specs=[pl.BlockSpec((tr, C), lambda i: (i, 0)),
                  pl.BlockSpec((1, C), lambda i: (0, 0)),
                  pl.BlockSpec((1, C), lambda i: (0, 0))],
        out_specs=pl.BlockSpec((tr, C), lambda i: (i, 0)),
        out_shape=jax.ShapeDtypeStruct((Rp, C), jnp.float32),
        compiler_params=_cparams("parallel"),
    )(xp, w.reshape(1, C), b.reshape(1, C))
    return out[:R]


# ----------------------- fused LayerNorm + matmul (ln1+in_proj) ---------------

def _ln_mm_kernel(x_ref, lw_ref, lb_ref, w_ref, o_ref):
    x = x_ref[...]
    mu = jnp.mean(x, axis=-1, keepdims=True)
    var = jnp.mean(jnp.square(x - mu), axis=-1, keepdims=True)
    xn = (x - mu) * lax.rsqrt(var + 1e-5) * lw_ref[...] + lb_ref[...]
    o_ref[...] = jnp.dot(xn.astype(jnp.bfloat16), w_ref[...],
                         preferred_element_type=jnp.float32).astype(o_ref.dtype)


@jax.jit
def pallas_ln_matmul(x2d, lw, lb, w):
    # LayerNorm(rows) then x @ w (no bias).  bf16 output (consumers re-cast).
    M, C = x2d.shape
    N = w.shape[1]
    tm = min(512, _round_up(M, 8))
    Mp = _round_up(M, tm)
    xp = jnp.pad(x2d.astype(jnp.float32), ((0, Mp - M), (0, 0)))
    out = pl.pallas_call(
        _ln_mm_kernel,
        grid=(Mp // tm,),
        in_specs=[pl.BlockSpec((tm, C), lambda i: (i, 0)),
                  pl.BlockSpec((1, C), lambda i: (0, 0)),
                  pl.BlockSpec((1, C), lambda i: (0, 0)),
                  pl.BlockSpec((C, N), lambda i: (0, 0))],
        out_specs=pl.BlockSpec((tm, N), lambda i: (i, 0)),
        out_shape=jax.ShapeDtypeStruct((Mp, N), jnp.bfloat16),
        compiler_params=_cparams("parallel"),
    )(xp, lw.reshape(1, C).astype(jnp.float32),
      lb.reshape(1, C).astype(jnp.float32), w.astype(jnp.bfloat16))
    return out[:M]


# ------------------ fused out_norm + gate(silu) + out_proj --------------------

def _norm_gate_mm_kernel(y_ref, z_ref, lw_ref, lb_ref, w_ref, o_ref):
    y = y_ref[...].astype(jnp.float32)
    mu = jnp.mean(y, axis=-1, keepdims=True)
    var = jnp.mean(jnp.square(y - mu), axis=-1, keepdims=True)
    yn = (y - mu) * lax.rsqrt(var + 1e-5) * lw_ref[...] + lb_ref[...]
    z = z_ref[...].astype(jnp.float32)
    g = yn * (z * (1.0 / (1.0 + jnp.exp(-z))))            # y * silu(z)
    o_ref[...] = jnp.dot(g.astype(jnp.bfloat16), w_ref[...],
                         preferred_element_type=jnp.float32)


@jax.jit
def pallas_norm_gate_matmul(y, z, lw, lb, w):
    M, Di = y.shape
    N = w.shape[1]
    tm = min(512, _round_up(M, 8))
    Mp = _round_up(M, tm)
    yp = jnp.pad(y.astype(jnp.bfloat16), ((0, Mp - M), (0, 0)))
    zp = jnp.pad(z.astype(jnp.bfloat16), ((0, Mp - M), (0, 0)))
    out = pl.pallas_call(
        _norm_gate_mm_kernel,
        grid=(Mp // tm,),
        in_specs=[pl.BlockSpec((tm, Di), lambda i: (i, 0)),
                  pl.BlockSpec((tm, Di), lambda i: (i, 0)),
                  pl.BlockSpec((1, Di), lambda i: (0, 0)),
                  pl.BlockSpec((1, Di), lambda i: (0, 0)),
                  pl.BlockSpec((Di, N), lambda i: (0, 0))],
        out_specs=pl.BlockSpec((tm, N), lambda i: (i, 0)),
        out_shape=jax.ShapeDtypeStruct((Mp, N), jnp.float32),
        compiler_params=_cparams("parallel"),
    )(yp, zp, lw.reshape(1, Di).astype(jnp.float32),
      lb.reshape(1, Di).astype(jnp.float32), w.astype(jnp.bfloat16))
    return out[:M]


# -------------------------- fused 3x3 convolution -----------------------------
# H-strip tiled; per dy the 3 dx shifts are concatenated so each dot has
# K = 3*Cin (better MXU fill, 3 dots instead of 9).

def _conv3x3_bias_kernel(xp_ref, w_ref, b_ref, o_ref):
    TH, W, Cout = o_ref.shape
    Cin = xp_ref.shape[-1]
    xfull = xp_ref[...]                                          # (TH+2, W+2, Cin) bf16
    acc = jnp.zeros((TH * W, Cout), jnp.float32)
    for dy in range(3):
        rows = xfull[dy:dy + TH]
        patch = jnp.concatenate([rows[:, 0:W], rows[:, 1:W + 1],
                                 rows[:, 2:W + 2]], axis=-1)     # (TH, W, 3*Cin)
        acc = acc + jnp.dot(patch.reshape(TH * W, 3 * Cin), w_ref[dy],
                            preferred_element_type=jnp.float32)
    o_ref[...] = (acc + b_ref[...]).reshape(TH, W, Cout)


def _conv3x3_nobias_kernel(xp_ref, w_ref, o_ref):
    TH, W, Cout = o_ref.shape
    Cin = xp_ref.shape[-1]
    xfull = xp_ref[...]
    acc = jnp.zeros((TH * W, Cout), jnp.float32)
    for dy in range(3):
        rows = xfull[dy:dy + TH]
        patch = jnp.concatenate([rows[:, 0:W], rows[:, 1:W + 1],
                                 rows[:, 2:W + 2]], axis=-1)
        acc = acc + jnp.dot(patch.reshape(TH * W, 3 * Cin), w_ref[dy],
                            preferred_element_type=jnp.float32)
    o_ref[...] = acc.reshape(TH, W, Cout)


def _conv3x3_impl(x, w, b):
    # x: (B, H, W, Cin); w: (9, Cin, Cout) in (dy, dx) tap order.
    B, H, W, Cin = x.shape
    Cout = w.shape[2]
    Wp = W + 2
    per_row = W * (8 * Cin + 8 * Cout) + Wp * Cin * 2
    TH = max(8, min(H, (4 * 1024 * 1024) // max(per_row, 1)))
    NS = pl.cdiv(H, TH)
    Hp = NS * TH
    xpad = jnp.pad(x.astype(jnp.bfloat16),
                   ((0, 0), (1, 1 + Hp - H), (1, 1), (0, 0)))
    w3 = w.reshape(3, 3 * Cin, Cout).astype(jnp.bfloat16)

    if NS == 1:
        strips = xpad                                            # (B, TH+2, Wp, Cin)
    else:
        strips = jnp.stack([xpad[:, s * TH: s * TH + TH + 2] for s in range(NS)],
                           axis=1).reshape(B * NS, TH + 2, Wp, Cin)

    in_specs = [pl.BlockSpec((None, TH + 2, Wp, Cin), lambda i: (i, 0, 0, 0)),
                pl.BlockSpec((3, 3 * Cin, Cout), lambda i: (0, 0, 0))]
    args = [strips, w3]
    if b is not None:
        in_specs.append(pl.BlockSpec((1, Cout), lambda i: (0, 0)))
        args.append(b.reshape(1, Cout).astype(jnp.float32))
        kernel = _conv3x3_bias_kernel
    else:
        kernel = _conv3x3_nobias_kernel

    out = pl.pallas_call(
        kernel,
        grid=(B * NS,),
        in_specs=in_specs,
        out_specs=pl.BlockSpec((None, TH, W, Cout), lambda i: (i, 0, 0, 0)),
        out_shape=jax.ShapeDtypeStruct((B * NS, TH, W, Cout), jnp.float32),
        compiler_params=_cparams("parallel"),
    )(*args)
    return out.reshape(B, Hp, W, Cout)[:, :H]


@jax.jit
def _conv3x3_bias(x, w, b):
    return _conv3x3_impl(x, w, b)


@jax.jit
def _conv3x3_nobias(x, w):
    return _conv3x3_impl(x, w, None)


def conv3x3(x, w, b=None):
    if b is None:
        return _conv3x3_nobias(x, w)
    return _conv3x3_bias(x, w, b)


# --------------------- depthwise 3x3 conv + SiLU (SS2D) -----------------------

def _dwconv3_silu_kernel(xp_ref, w_ref, b_ref, o_ref):
    TH, W, C = o_ref.shape
    xfull = xp_ref[...].astype(jnp.float32)
    acc = jnp.zeros((TH, W, C), jnp.float32)
    for dy in range(3):
        for dx in range(3):
            tap = w_ref[dy * 3 + dx: dy * 3 + dx + 1, :]          # (1, C)
            acc = acc + xfull[dy:dy + TH, dx:dx + W, :] * tap
    acc = acc + b_ref[...]
    o_ref[...] = (acc * (1.0 / (1.0 + jnp.exp(-acc)))).astype(o_ref.dtype)


@jax.jit
def pallas_dwconv3_silu(x, w9, b):
    # x: (B, H, W, C) -> (B, H, W, C) bf16, depthwise 3x3 + SiLU, H-strip tiled.
    B, H, W, C = x.shape
    Wp = W + 2
    per_row = W * C * 10 + Wp * C * 2
    TH = max(8, min(H, (4 * 1024 * 1024) // max(per_row, 1)))
    NS = pl.cdiv(H, TH)
    Hp = NS * TH
    xpad = jnp.pad(x.astype(jnp.bfloat16),
                   ((0, 0), (1, 1 + Hp - H), (1, 1), (0, 0)))
    if NS == 1:
        strips = xpad
    else:
        strips = jnp.stack([xpad[:, s * TH: s * TH + TH + 2] for s in range(NS)],
                           axis=1).reshape(B * NS, TH + 2, Wp, C)
    out = pl.pallas_call(
        _dwconv3_silu_kernel,
        grid=(B * NS,),
        in_specs=[pl.BlockSpec((None, TH + 2, Wp, C), lambda i: (i, 0, 0, 0)),
                  pl.BlockSpec((9, C), lambda i: (0, 0)),
                  pl.BlockSpec((1, C), lambda i: (0, 0))],
        out_specs=pl.BlockSpec((None, TH, W, C), lambda i: (i, 0, 0, 0)),
        out_shape=jax.ShapeDtypeStruct((B * NS, TH, W, C), jnp.bfloat16),
        compiler_params=_cparams("parallel"),
    )(strips, w9.astype(jnp.float32), b.reshape(1, C).astype(jnp.float32))
    return out.reshape(B, Hp, W, C)[:, :H]


# --------------------------- selective scan (SSM) -----------------------------

def _selective_scan_kernel(u_ref, dl_ref, A_ref, B_ref, C_ref, Dsk_ref,
                           o_ref, h_ref):
    # u, dl: (CL, G, TD) bf16; B, C: (CL, G, S) bf16
    # A: (G, S, TD) f32; Dsk: (G, 1, TD) f32; o: (CL, G, TD) f32
    # h_ref: persistent (G, S, TD) f32 scratch, carried across L-chunks; inside
    # a chunk the state lives in the fori_loop carry (no per-step VMEM traffic).
    @pl.when(pl.program_id(2) == 0)
    def _():
        h_ref[...] = jnp.zeros_like(h_ref)

    A = A_ref[...]
    Dsk = Dsk_ref[...][:, 0, :]                                   # (G, TD)
    CL, G, TD = u_ref.shape
    S = A_ref.shape[1]

    def body(l, h):
        u_l = u_ref[l].astype(jnp.float32)                        # (G, TD)
        delta = dl_ref[l].astype(jnp.float32)                     # (G, TD)
        dA = jnp.exp(delta[:, None, :] * A)                       # (G, S, TD)
        dBu = B_ref[l].astype(jnp.float32)[:, :, None] * (delta * u_l)[:, None, :]
        h = dA * h + dBu
        y = jnp.sum(h * C_ref[l].astype(jnp.float32)[:, :, None], axis=1)
        o_ref[l] = y + Dsk * u_l
        return h

    unroll = 2 if G * S * TD <= 8192 else 1
    h_ref[...] = lax.fori_loop(0, CL, body, h_ref[...], unroll=unroll)


@jax.jit
def pallas_selective_scan(u, delta, A, Bm, Cm, Dsk):
    # u, delta: (L, NSEQ, D); Bm, Cm: (L, NSEQ, S); A: (NSEQ, S, D); Dsk: (NSEQ,1,D)
    L, NSEQ, D = u.shape
    S = Bm.shape[2]

    G = NSEQ if NSEQ < 8 else 8                      # sequences per grid step
    NSp = _round_up(NSEQ, G)
    TD = D if D <= 128 else 128                      # D sub-block (lane width)
    Dp = _round_up(D, TD)
    per_step = G * (8 * TD + 4 * S)                  # bytes per timestep (all blocks)
    CL = min(L, max(64, (4 * 1024 * 1024) // per_step), 512)
    Lp = _round_up(L, CL)

    def pad3(a, d2):
        return jnp.pad(a, ((0, Lp - L), (0, NSp - NSEQ), (0, d2 - a.shape[2])))

    u_p = pad3(u.astype(jnp.bfloat16), Dp)
    dl_p = pad3(delta.astype(jnp.bfloat16), Dp)
    B_p = pad3(Bm.astype(jnp.bfloat16), S)
    C_p = pad3(Cm.astype(jnp.bfloat16), S)
    A_p = jnp.pad(A.astype(jnp.float32), ((0, NSp - NSEQ), (0, 0), (0, Dp - D)))
    D_p = jnp.pad(Dsk.astype(jnp.float32), ((0, NSp - NSEQ), (0, 0), (0, Dp - D)))

    out = pl.pallas_call(
        _selective_scan_kernel,
        grid=(NSp // G, Dp // TD, Lp // CL),
        in_specs=[pl.BlockSpec((CL, G, TD), lambda g, d, l: (l, g, d)),
                  pl.BlockSpec((CL, G, TD), lambda g, d, l: (l, g, d)),
                  pl.BlockSpec((G, S, TD), lambda g, d, l: (g, 0, d)),
                  pl.BlockSpec((CL, G, S), lambda g, d, l: (l, g, 0)),
                  pl.BlockSpec((CL, G, S), lambda g, d, l: (l, g, 0)),
                  pl.BlockSpec((G, 1, TD), lambda g, d, l: (g, 0, d))],
        out_specs=pl.BlockSpec((CL, G, TD), lambda g, d, l: (l, g, d)),
        out_shape=jax.ShapeDtypeStruct((Lp, NSp, Dp), jnp.float32),
        scratch_shapes=[pltpu.VMEM((G, S, TD), jnp.float32)],
        compiler_params=_cparams("parallel", "parallel", "arbitrary"),
    )(u_p, dl_p, A_p, B_p, C_p, D_p)
    return out[:L, :NSEQ, :D]


# --------------------------- JAX glue building blocks --------------------------

def conv1x1(x, w, b=None):
    B, H, W, Cin = x.shape
    out = matmul(x.reshape(B * H * W, Cin), w, b)
    return out.reshape(B, H, W, w.shape[1])


def pixel_unshuffle2(x):   # NHWC equivalent of torch.nn.PixelUnshuffle(2)
    B, H, W, C = x.shape
    x = x.reshape(B, H // 2, 2, W // 2, 2, C)
    x = jnp.transpose(x, (0, 1, 3, 5, 2, 4))
    return x.reshape(B, H // 2, W // 2, C * 4)


def pixel_shuffle2(x):     # NHWC equivalent of torch.nn.PixelShuffle(2)
    B, H, W, C4 = x.shape
    C = C4 // 4
    x = x.reshape(B, H, W, C, 2, 2)
    x = jnp.transpose(x, (0, 1, 4, 2, 5, 3))
    return x.reshape(B, H * 2, W * 2, C)


def layernorm_nhwc(x, w, b):
    B, H, W, C = x.shape
    return pallas_layernorm(x.reshape(B * H * W, C), w, b).reshape(B, H, W, C)


def channel_attention(p, x):
    # Tiny (M=B) squeeze/excite GEMMs: left to plain XLA (Pallas launch overhead
    # would dwarf the FLOPs).
    y = jnp.mean(x, axis=(1, 2))                        # AdaptiveAvgPool2d(1)
    y = jnp.maximum(jnp.dot(y, p["w1"]) + p["b1"], 0.0)
    y = jax.nn.sigmoid(jnp.dot(y, p["w2"]) + p["b2"])
    return x * y[:, None, None, :]


def cab(p, x):
    h = conv3x3(x, p["w1"], p["b1"])
    h = jax.nn.gelu(h, approximate=False)               # torch.nn.GELU (exact erf)
    h = conv3x3(h, p["w2"], p["b2"])
    return channel_attention(p["ca"], h)


def ss2d_forward(p, x, ln_w, ln_b):
    # x: (B,H,W,C) un-normalized; ln_1 is fused into the in_proj matmul.
    B, H, W, C = x.shape
    d_inner, d_state, dt_rank = p["d_inner"], p["d_state"], p["dt_rank"]
    L = H * W
    K = 4

    xz = pallas_ln_matmul(x.reshape(B * L, C), ln_w, ln_b, p["in_proj_w"])
    xz = xz.reshape(B, H, W, 2 * d_inner)                           # bf16
    xpart = xz[..., :d_inner]
    z = xz[..., d_inner:]

    xc = pallas_dwconv3_silu(xpart, p["conv_w"], p["conv_b"])       # (B,H,W,D) bf16

    # 4 scan directions, D kept last (lane-dense), all in bf16.
    x_hw = xc.reshape(B, L, d_inner)                                # (h,w) order
    x_wh = jnp.transpose(xc, (0, 2, 1, 3)).reshape(B, L, d_inner)   # (w,h) order
    xs = jnp.stack([x_hw, x_wh,
                    jnp.flip(x_hw, axis=1), jnp.flip(x_wh, axis=1)], axis=1)

    xs_k = jnp.transpose(xs, (1, 0, 2, 3)).reshape(K, B * L, d_inner)
    x_dbl = pallas_bmm(xs_k, p["x_proj_w"], out_dtype=jnp.bfloat16)   # (K, BL, c)
    dts = x_dbl[..., :dt_rank]
    Bs = x_dbl[..., dt_rank:dt_rank + d_state]
    Cs = x_dbl[..., dt_rank + d_state:]
    dt_full = pallas_bmm(dts, p["dt_projs_w"], out_dtype=jnp.float32)  # (K, BL, D)

    # delta_softplus with bias (matches F.softplus), computed in f32.
    delta = jax.nn.softplus(dt_full + p["dt_projs_b"][:, None, :])

    # pack for the scan: sequence index kb = k*B + b, time-major (L, KB, ...)
    def to_scan(a, lastdim, dtype):
        return jnp.transpose(a.reshape(K, B, L, lastdim),
                             (2, 0, 1, 3)).reshape(L, K * B, lastdim).astype(dtype)

    u_s = to_scan(xs_k, d_inner, jnp.bfloat16)
    dl_s = to_scan(delta, d_inner, jnp.bfloat16)
    B_s = to_scan(Bs, d_state, jnp.bfloat16)
    C_s = to_scan(Cs, d_state, jnp.bfloat16)

    A = -jnp.exp(p["A_logs"].astype(jnp.float32)).reshape(K, d_inner, d_state)
    A_s = jnp.repeat(jnp.transpose(A, (0, 2, 1)), B, axis=0)        # (KB, S, D)
    D_s = jnp.repeat(p["Ds"].reshape(K, 1, d_inner), B, axis=0)     # (KB, 1, D)

    ys = pallas_selective_scan(u_s, dl_s, A_s, B_s, C_s, D_s)       # (L, KB, D)
    out_y = jnp.transpose(ys.reshape(L, K, B, d_inner), (2, 1, 0, 3))  # (B,K,L,D)

    y1 = out_y[:, 0]
    inv = jnp.flip(out_y[:, 2:4], axis=2)
    y2 = inv[:, 0]
    wh = jnp.transpose(out_y[:, 1].reshape(B, W, H, d_inner),
                       (0, 2, 1, 3)).reshape(B, L, d_inner)
    invwh = jnp.transpose(inv[:, 1].reshape(B, W, H, d_inner),
                          (0, 2, 1, 3)).reshape(B, L, d_inner)
    y = y1 + y2 + wh + invwh                                        # (B, L, D)

    out = pallas_norm_gate_matmul(y.reshape(B * L, d_inner),
                                  z.reshape(B * L, d_inner),
                                  p["out_norm_w"], p["out_norm_b"],
                                  p["out_proj_w"])
    return out.reshape(B, H, W, C)


def vss_block(p, x_tokens, H, W):
    B, L, C = x_tokens.shape
    inp = x_tokens.reshape(B, H, W, C)
    # TODO(synk): drop_path is nn.Dropout(0.0) in the reference -> identity here.
    x1 = inp * p["skip_scale"] + ss2d_forward(p["ss2d"], inp,
                                              p["ln1_w"], p["ln1_b"])
    # TODO(synk): ln2 could be folded into the first CAB conv, but the conv's
    # zero padding must stay un-normalized, so it is kept standalone.
    xn2 = layernorm_nhwc(x1, p["ln2_w"], p["ln2_b"])
    x2 = x1 * p["skip_scale2"] + cab(p["cab"], xn2)
    return x2.reshape(B, L, C)


def downsample(p, x_tokens, H, W):
    B, L, C = x_tokens.shape
    xh = conv3x3(x_tokens.reshape(B, H, W, C), p["w"])      # C -> C//2
    xh = pixel_unshuffle2(xh)                               # -> 2C
    return xh.reshape(B, (H // 2) * (W // 2), 2 * C)


def upsample(p, x_tokens, H, W):
    B, L, C = x_tokens.shape
    xh = conv3x3(x_tokens.reshape(B, H, W, C), p["w"])      # C -> 2C
    xh = pixel_shuffle2(xh)                                 # -> C//2
    return xh.reshape(B, (H * 2) * (W * 2), C // 2)


def mambair_unet_forward(params, inp_img):
    # inp_img: (B, 3, H, W) NCHW, matching the PyTorch module.
    B, _, H, W = inp_img.shape
    x = jnp.transpose(inp_img, (0, 2, 3, 1)).astype(jnp.float32)   # NHWC

    feat = conv3x3(x, params["patch_embed_w"])
    dim = feat.shape[-1]
    inp_enc1 = feat.reshape(B, H * W, dim)

    out1 = inp_enc1
    for bp in params["encoder_level1"]:
        out1 = vss_block(bp, out1, H, W)

    inp2 = downsample(params["down1_2"], out1, H, W)
    out2 = inp2
    for bp in params["encoder_level2"]:
        out2 = vss_block(bp, out2, H // 2, W // 2)

    inp3 = downsample(params["down2_3"], out2, H // 2, W // 2)
    out3 = inp3
    for bp in params["encoder_level3"]:
        out3 = vss_block(bp, out3, H // 4, W // 4)

    inp4 = downsample(params["down3_4"], out3, H // 4, W // 4)
    latent = inp4
    for bp in params["latent"]:
        latent = vss_block(bp, latent, H // 8, W // 8)

    d3 = upsample(params["up4_3"], latent, H // 8, W // 8)
    d3 = jnp.concatenate([d3, out3], axis=2)
    d3h = conv1x1(d3.reshape(B, H // 4, W // 4, d3.shape[-1]),
                  params["reduce_chan_level3_w"])
    d3 = d3h.reshape(B, (H // 4) * (W // 4), d3h.shape[-1])
    for bp in params["decoder_level3"]:
        d3 = vss_block(bp, d3, H // 4, W // 4)

    d2 = upsample(params["up3_2"], d3, H // 4, W // 4)
    d2 = jnp.concatenate([d2, out2], axis=2)
    d2h = conv1x1(d2.reshape(B, H // 2, W // 2, d2.shape[-1]),
                  params["reduce_chan_level2_w"])
    d2 = d2h.reshape(B, (H // 2) * (W // 2), d2h.shape[-1])
    for bp in params["decoder_level2"]:
        d2 = vss_block(bp, d2, H // 2, W // 2)

    d1 = upsample(params["up2_1"], d2, H // 2, W // 2)
    d1 = jnp.concatenate([d1, out1], axis=2)
    for bp in params["decoder_level1"]:
        d1 = vss_block(bp, d1, H, W)
    for bp in params["refinement"]:
        d1 = vss_block(bp, d1, H, W)

    out = conv3x3(d1.reshape(B, H, W, d1.shape[-1]), params["output_w"])
    return jnp.transpose(out, (0, 3, 1, 2)) + inp_img.astype(jnp.float32)


# ------------------------------- parameter init --------------------------------

class KeyGen:
    def __init__(self, seed=0):
        self._key = jax.random.PRNGKey(seed)

    def __call__(self):
        self._key, sub = jax.random.split(self._key)
        return sub


def _w(kg, shape, scale=0.02):
    return scale * jax.random.normal(kg(), shape, jnp.float32)


def init_ss2d(kg, d_model, d_state, expand,
              dt_min=0.001, dt_max=0.1, dt_init_floor=1e-4):
    d_inner = int(expand * d_model)
    dt_rank = math.ceil(d_model / 16)
    K = 4
    c_proj = dt_rank + 2 * d_state

    dt_std = dt_rank ** (-0.5)
    dt_w = jax.random.uniform(kg(), (K, dt_rank, d_inner), jnp.float32,
                              minval=-dt_std, maxval=dt_std)
    rnd = jax.random.uniform(kg(), (K, d_inner), jnp.float32)
    dt = jnp.exp(rnd * (math.log(dt_max) - math.log(dt_min)) + math.log(dt_min))
    dt = jnp.maximum(dt, dt_init_floor)
    inv_dt = dt + jnp.log(-jnp.expm1(-dt))

    A = jnp.arange(1, d_state + 1, dtype=jnp.float32)
    A_logs = jnp.log(jnp.tile(A[None, :], (K * d_inner, 1)))        # (K*d_inner, S)

    return {
        "d_inner": d_inner, "d_state": d_state, "dt_rank": dt_rank,
        "in_proj_w": _w(kg, (d_model, 2 * d_inner)),
        "conv_w": _w(kg, (9, d_inner)),
        "conv_b": jnp.zeros((d_inner,), jnp.float32),
        "x_proj_w": _w(kg, (K, d_inner, c_proj)),
        "dt_projs_w": dt_w,
        "dt_projs_b": inv_dt,
        "A_logs": A_logs,
        "Ds": jnp.ones((K * d_inner,), jnp.float32),
        "out_norm_w": jnp.ones((d_inner,), jnp.float32),
        "out_norm_b": jnp.zeros((d_inner,), jnp.float32),
        "out_proj_w": _w(kg, (d_inner, d_model)),
    }


def init_cab(kg, num_feat, compress_ratio=3, squeeze_factor=30):
    mid = num_feat // compress_ratio
    sq = num_feat // squeeze_factor
    return {
        "w1": _w(kg, (9, num_feat, mid)),
        "b1": jnp.zeros((mid,), jnp.float32),
        "w2": _w(kg, (9, mid, num_feat)),
        "b2": jnp.zeros((num_feat,), jnp.float32),
        "ca": {
            "w1": _w(kg, (num_feat, sq)),
            "b1": jnp.zeros((sq,), jnp.float32),
            "w2": _w(kg, (sq, num_feat)),
            "b2": jnp.zeros((num_feat,), jnp.float32),
        },
    }


def init_vss_block(kg, hidden_dim, d_state, expand):
    return {
        "ln1_w": jnp.ones((hidden_dim,), jnp.float32),
        "ln1_b": jnp.zeros((hidden_dim,), jnp.float32),
        "skip_scale": jnp.ones((hidden_dim,), jnp.float32),
        "ss2d": init_ss2d(kg, hidden_dim, d_state, expand),
        "ln2_w": jnp.ones((hidden_dim,), jnp.float32),
        "ln2_b": jnp.zeros((hidden_dim,), jnp.float32),
        "skip_scale2": jnp.ones((hidden_dim,), jnp.float32),
        "cab": init_cab(kg, hidden_dim),
    }


def init_mambair_unet(kg, inp_channels=3, out_channels=3, dim=32,
                      num_blocks=(1, 1, 1, 1), num_refinement_blocks=1,
                      mlp_ratio=2.0):
    base_d_state = 4
    expand = int(mlp_ratio)
    p = {}
    p["patch_embed_w"] = _w(kg, (9, inp_channels, dim))
    p["encoder_level1"] = [init_vss_block(kg, dim, base_d_state * 4, expand)
                           for _ in range(num_blocks[0])]
    p["down1_2"] = {"w": _w(kg, (9, dim, dim // 2))}
    p["encoder_level2"] = [init_vss_block(kg, dim * 2, base_d_state * 4, expand)
                           for _ in range(num_blocks[1])]
    p["down2_3"] = {"w": _w(kg, (9, dim * 2, dim))}
    p["encoder_level3"] = [init_vss_block(kg, dim * 4, base_d_state * 4, expand)
                           for _ in range(num_blocks[2])]
    p["down3_4"] = {"w": _w(kg, (9, dim * 4, dim * 2))}
    p["latent"] = [init_vss_block(kg, dim * 8, int(base_d_state / 2 * 8), expand)
                   for _ in range(num_blocks[3])]
    p["up4_3"] = {"w": _w(kg, (9, dim * 8, dim * 16))}
    p["reduce_chan_level3_w"] = _w(kg, (dim * 8, dim * 4))
    p["decoder_level3"] = [init_vss_block(kg, dim * 4, base_d_state * 4, expand)
                           for _ in range(num_blocks[2])]
    p["up3_2"] = {"w": _w(kg, (9, dim * 4, dim * 8))}
    p["reduce_chan_level2_w"] = _w(kg, (dim * 4, dim * 2))
    p["decoder_level2"] = [init_vss_block(kg, dim * 2, base_d_state * 4, expand)
                           for _ in range(num_blocks[1])]
    p["up2_1"] = {"w": _w(kg, (9, dim * 2, dim * 4))}
    p["decoder_level1"] = [init_vss_block(kg, dim * 2, base_d_state * 4, expand)
                           for _ in range(num_blocks[0])]
    p["refinement"] = [init_vss_block(kg, dim * 2, base_d_state * 4, expand)
                       for _ in range(num_refinement_blocks)]
    p["output_w"] = _w(kg, (9, dim * 2, out_channels))
    return p


# ------------------------------------ main -------------------------------------

if __name__ == "__main__":
    kg = KeyGen(0)
    # dim must be >= 30 so ChannelAttention's hard-coded squeeze_factor=30 gives >=1.
    params = init_mambair_unet(kg, inp_channels=3, out_channels=3, dim=32,
                               num_blocks=(1, 1, 1, 1), num_refinement_blocks=1,
                               mlp_ratio=2.0)
    inp_img = jax.random.normal(jax.random.PRNGKey(0), (2, 3, 16, 16), jnp.float32)

    out = mambair_unet_forward(params, inp_img)
    out = jax.block_until_ready(out)

    assert out.shape == (2, 3, 16, 16), out.shape
    assert bool(jnp.all(jnp.isfinite(out)))
    print("KERNEL_OK")
</pallas_src>

<mosaic_0001>
module attributes {stable_mosaic.version = 11 : i64} {
  func.func @_conv3x3_nobias_kernel(%arg0: i32, %arg1: memref<1x18x18x3xbf16, #tpu.memory_space<vmem>>, %arg2: memref<3x9x32xbf16, #tpu.memory_space<vmem>>, %arg3: memref<1x16x16x32xf32, #tpu.memory_space<vmem>>) attributes {dimension_semantics = [#tpu.dimension_semantics<parallel>], iteration_bounds = array<i64: 2>, scalar_prefetch = 0 : i64, scratch_operands = 0 : i64, tpu.core_type = #tpu.core_type<tc>, window_params = [{transform_indices = @transform_0, window_bounds = array<i64: 1, 18, 18, 3>}, {pipeline_mode = #tpu.pipeline_mode<synchronous>, transform_indices = @transform_1, window_bounds = array<i64: 3, 9, 32>}, {transform_indices = @transform_2, window_bounds = array<i64: 1, 16, 16, 32>}]} {
    %c0 = arith.constant 0 : index
    %c0_0 = arith.constant 0 : index
    %c0_1 = arith.constant 0 : index
    %c0_2 = arith.constant 0 : index
    %0 = vector.load %arg1[%c0, %c0_0, %c0_1, %c0_2] : memref<1x18x18x3xbf16, #tpu.memory_space<vmem>>, vector<1x18x18x3xbf16>
    %1 = vector.shape_cast %0 : vector<1x18x18x3xbf16> to vector<18x18x3xbf16>
    %cst = arith.constant 0.000000e+00 : f32
    %2 = vector.broadcast %cst : f32 to vector<256x32xf32>
    %3 = vector.extract_strided_slice %1 {offsets = [0, 0, 0], sizes = [16, 18, 3], strides = [1, 1, 1]} : vector<18x18x3xbf16> to vector<16x18x3xbf16>
    %4 = vector.extract_strided_slice %3 {offsets = [0, 0, 0], sizes = [16, 16, 3], strides = [1, 1, 1]} : vector<16x18x3xbf16> to vector<16x16x3xbf16>
    %5 = vector.extract_strided_slice %3 {offsets = [0, 1, 0], sizes = [16, 16, 3], strides = [1, 1, 1]} : vector<16x18x3xbf16> to vector<16x16x3xbf16>
    %6 = vector.extract_strided_slice %3 {offsets = [0, 2, 0], sizes = [16, 16, 3], strides = [1, 1, 1]} : vector<16x18x3xbf16> to vector<16x16x3xbf16>
    %7 = tpu.concatenate %4, %5, %6 in 2 : vector<16x16x3xbf16>, vector<16x16x3xbf16>, vector<16x16x3xbf16> -> vector<16x16x9xbf16>
    %8 = vector.shape_cast %7 : vector<16x16x9xbf16> to vector<256x9xbf16>
    %c0_3 = arith.constant 0 : index
    %c0_4 = arith.constant 0 : index
    %c0_5 = arith.constant 0 : index
    %9 = vector.load %arg2[%c0_3, %c0_4, %c0_5] : memref<3x9x32xbf16, #tpu.memory_space<vmem>>, vector<1x9x32xbf16>
    %10 = vector.shape_cast %9 : vector<1x9x32xbf16> to vector<9x32xbf16>
    %cst_6 = arith.constant dense<0.000000e+00> : vector<256x32xf32>
    %11 = tpu.matmul %8, %10, %cst_6 {dimension_numbers = #tpu.dot_dimension_numbers<[1], [0], [0], [1], [0, 0, 1, 1], [], []>} : vector<256x9xbf16>, vector<9x32xbf16>, vector<256x32xf32> -> vector<256x32xf32>
    %12 = arith.addf %2, %11 : vector<256x32xf32>
    %13 = vector.extract_strided_slice %1 {offsets = [1, 0, 0], sizes = [16, 18, 3], strides = [1, 1, 1]} : vector<18x18x3xbf16> to vector<16x18x3xbf16>
    %14 = vector.extract_strided_slice %13 {offsets = [0, 0, 0], sizes = [16, 16, 3], strides = [1, 1, 1]} : vector<16x18x3xbf16> to vector<16x16x3xbf16>
    %15 = vector.extract_strided_slice %13 {offsets = [0, 1, 0], sizes = [16, 16, 3], strides = [1, 1, 1]} : vector<16x18x3xbf16> to vector<16x16x3xbf16>
    %16 = vector.extract_strided_slice %13 {offsets = [0, 2, 0], sizes = [16, 16, 3], strides = [1, 1, 1]} : vector<16x18x3xbf16> to vector<16x16x3xbf16>
    %17 = tpu.concatenate %14, %15, %16 in 2 : vector<16x16x3xbf16>, vector<16x16x3xbf16>, vector<16x16x3xbf16> -> vector<16x16x9xbf16>
    %18 = vector.shape_cast %17 : vector<16x16x9xbf16> to vector<256x9xbf16>
    %c1 = arith.constant 1 : index
    %c0_7 = arith.constant 0 : index
    %c0_8 = arith.constant 0 : index
    %19 = vector.load %arg2[%c1, %c0_7, %c0_8] : memref<3x9x32xbf16, #tpu.memory_space<vmem>>, vector<1x9x32xbf16>
    %20 = vector.shape_cast %19 : vector<1x9x32xbf16> to vector<9x32xbf16>
    %cst_9 = arith.constant dense<0.000000e+00> : vector<256x32xf32>
    %21 = tpu.matmul %18, %20, %cst_9 {dimension_numbers = #tpu.dot_dimension_numbers<[1], [0], [0], [1], [0, 0, 1, 1], [], []>} : vector<256x9xbf16>, vector<9x32xbf16>, vector<256x32xf32> -> vector<256x32xf32>
    %22 = arith.addf %12, %21 : vector<256x32xf32>
    %23 = vector.extract_strided_slice %1 {offsets = [2, 0, 0], sizes = [16, 18, 3], strides = [1, 1, 1]} : vector<18x18x3xbf16> to vector<16x18x3xbf16>
    %24 = vector.extract_strided_slice %23 {offsets = [0, 0, 0], sizes = [16, 16, 3], strides = [1, 1, 1]} : vector<16x18x3xbf16> to vector<16x16x3xbf16>
    %25 = vector.extract_strided_slice %23 {offsets = [0, 1, 0], sizes = [16, 16, 3], strides = [1, 1, 1]} : vector<16x18x3xbf16> to vector<16x16x3xbf16>
    %26 = vector.extract_strided_slice %23 {offsets = [0, 2, 0], sizes = [16, 16, 3], strides = [1, 1, 1]} : vector<16x18x3xbf16> to vector<16x16x3xbf16>
    %27 = tpu.concatenate %24, %25, %26 in 2 : vector<16x16x3xbf16>, vector<16x16x3xbf16>, vector<16x16x3xbf16> -> vector<16x16x9xbf16>
    %28 = vector.shape_cast %27 : vector<16x16x9xbf16> to vector<256x9xbf16>
    %c2 = arith.constant 2 : index
    %c0_10 = arith.constant 0 : index
    %c0_11 = arith.constant 0 : index
    %29 = vector.load %arg2[%c2, %c0_10, %c0_11] : memref<3x9x32xbf16, #tpu.memory_space<vmem>>, vector<1x9x32xbf16>
    %30 = vector.shape_cast %29 : vector<1x9x32xbf16> to vector<9x32xbf16>
    %cst_12 = arith.constant dense<0.000000e+00> : vector<256x32xf32>
    %31 = tpu.matmul %28, %30, %cst_12 {dimension_numbers = #tpu.dot_dimension_numbers<[1], [0], [0], [1], [0, 0, 1, 1], [], []>} : vector<256x9xbf16>, vector<9x32xbf16>, vector<256x32xf32> -> vector<256x32xf32>
    %32 = arith.addf %22, %31 : vector<256x32xf32>
    %33 = vector.shape_cast %32 : vector<256x32xf32> to vector<16x16x32xf32>
    %c0_13 = arith.constant 0 : index
    %c0_14 = arith.constant 0 : index
    %c0_15 = arith.constant 0 : index
    %c0_16 = arith.constant 0 : index
    %34 = vector.load %arg3[%c0_13, %c0_14, %c0_15, %c0_16] : memref<1x16x16x32xf32, #tpu.memory_space<vmem>>, vector<1x16x16x32xf32>
    %35 = vector.shape_cast %34 : vector<1x16x16x32xf32> to vector<16x16x32xf32>
    %36 = vector.shape_cast %33 : vector<16x16x32xf32> to vector<1x16x16x32xf32>
    tpu.vector_store %arg3[%c0_13, %c0_14, %c0_15, %c0_16], %36 {strides = array<i32>} : memref<1x16x16x32xf32, #tpu.memory_space<vmem>>, vector<1x16x16x32xf32>,
    return
  }
  func.func @transform_0(%arg0: i32) -> (i32, i32, i32, i32) {
    %c0_i32 = arith.constant 0 : i32
    %c0_i32_0 = arith.constant 0 : i32
    %c0_i32_1 = arith.constant 0 : i32
    %c0_i32_2 = arith.constant 0 : i32
    return %arg0, %c0_i32, %c0_i32_0, %c0_i32_1 : i32, i32, i32, i32
  }
  func.func @transform_1(%arg0: i32) -> (i32, i32, i32) {
    %c0_i32 = arith.constant 0 : i32
    %c0_i32_0 = arith.constant 0 : i32
    %c0_i32_1 = arith.constant 0 : i32
    %c0_i32_2 = arith.constant 0 : i32
    return %c0_i32, %c0_i32_0, %c0_i32_1 : i32, i32, i32
  }
  func.func @transform_2(%arg0: i32) -> (i32, i32, i32, i32) {
    %c0_i32 = arith.constant 0 : i32
    %c0_i32_0 = arith.constant 0 : i32
    %c0_i32_1 = arith.constant 0 : i32
    %c0_i32_2 = arith.constant 0 : i32
    return %arg0, %c0_i32, %c0_i32_0, %c0_i32_1 : i32, i32, i32, i32
  }
}

</mosaic_0001>

<llo_original>
// kernel: _conv3x3_nobias.1
$region0: #{_conv3x3_nobias.1}
  #allocation0 [shape = 'u32[]', space=smem, size = 0x4, offset = 0x4, fixed_abs, tag = 'smem constant byte address 0x4 - core index']
  #allocation1 [shape = 'u32[144,128]{1,0:T(1,128)}', space=vmem, size = 0x12000, scoped, tag = 'internal scratch']
  %s0 = inlined_call_operand.vmem [shape: bf16[2,18,18,3], index: 0, kind: input, shape index: {}]
  %s1 = inlined_call_operand.vmem [shape: bf16[3,9,32], index: 1, kind: input, shape index: {}]
  %s2 = inlined_call_operand.hbm [shape: f32[2,16,16,32], index: 2, kind: output, shape index: {}]
  %s3 = sld [smem:[#allocation0]]
  $region41: #{_conv3x3_nobias.1} parent=0
    _
  %s5 = ssub.s32 1, %s3
  %s6 = scalar_select 0, %s5, %s3
  $region1: #{_conv3x3_nobias.1} parent=0
    #allocation2 [shape = 'u8[262144]{0}', space=vmem, size = 0x40000, scoped, tag = 'output window, operand 0']
    #allocation3 [shape = 's32[2]{0}', space=sflag, size = 0x8, scoped, tag = 'scoped memory for _conv3x3_nobias.1']
    %7 = vsyncpa [#allocation3], 0
    %s8 = scalar_lea.sflag [#allocation3], 1
    %9 = vsyncpa %s8, 0
    loop: start=0, step=1, limit=4
    $region2: #{_conv3x3_nobias.1} parent=1 // loop_pre_header
      _
    $region3: #{_conv3x3_nobias.1} parent=1 // loop_header
      %s11 = sphi 0, %s15
      %p12 = scmp.ge.s32.totalorder %s11, 4
      %s21 = sphi 0, %s23
      %s24 = sphi 0, %s21
      %s25 = sphi 0, %s24
      %s41 = sphi 0, %s25
      %s45 = sphi 0, %s45
      %s47 = sphi 0, %s45
      %s48 = sphi 0, %s47
      %s62 = sphi 0, %s48
      %s68 = sphi 0, %s70
      %s71 = sphi 0, %s68
      %s72 = sphi 0, %s71
      %s88 = sphi 0, %s72
    $region4: #{_conv3x3_nobias.1} parent=1 // loop_header_branch
      %14 = sbr.rel (%p12) target = $region8
    $region5: #{_conv3x3_nobias.1} parent=1 // loop_body
      %s16 = ssub.s32 %s11, 1
      %s17 = ssub.s32 %s11, 2
      %s18 = sadd.s32 %s11, 1
      %s19 = ssub.s32 %s11, %s18
      %p20 = scmp.eq.s32.totalorder %s19, 0
      %s22 = sadd.s32 %s21, 1
      %s23 = scalar_select %p20, %s21, %s22
      %p26 = pneg %p20
      %p27 = scmp.eq.s32.totalorder %s11, 1
      %p28 = por %p26, %p27
      %p29 = scmp.ne.s32.totalorder %s21, %s24
      %p30 = scmp.eq.s32.totalorder %s11, 0
      %p31 = por %p29, %p30
      %p32 = scmp.ne.s32.totalorder %s21, %s24
      %p33 = scmp.eq.s32.totalorder %s16, 1
      %p34 = por %p32, %p33
      %p35 = scmp.ne.s32.totalorder %s24, %s25
      %p36 = scmp.eq.s32.totalorder %s16, 0
      %p37 = por %p35, %p36
      %p38 = scmp.ne.s32.totalorder %s24, %s25
      %p39 = scmp.eq.s32.totalorder %s17, 1
      %p40 = por %p38, %p39
      %p42 = scmp.ne.s32.totalorder %s25, %s41
      %p43 = scmp.eq.s32.totalorder %s17, 0
      %p44 = por %p42, %p43
      %s46 = sadd.s32 %s45, 1
      %p49 = scmp.eq.s32.totalorder %s11, 1
      %p50 = scmp.ne.s32.totalorder %s45, %s47
      %p51 = scmp.eq.s32.totalorder %s11, 0
      %p52 = por %p50, %p51
      %p53 = scmp.ne.s32.totalorder %s45, %s47
      %p54 = scmp.eq.s32.totalorder %s16, 1
      %p55 = por %p53, %p54
      %p56 = scmp.ne.s32.totalorder %s47, %s48
      %p57 = scmp.eq.s32.totalorder %s16, 0
      %p58 = por %p56, %p57
      %p59 = scmp.ne.s32.totalorder %s47, %s48
      %p60 = scmp.eq.s32.totalorder %s17, 1
      %p61 = por %p59, %p60
      %p63 = scmp.ne.s32.totalorder %s48, %s62
      %p64 = scmp.eq.s32.totalorder %s17, 0
      %p65 = por %p63, %p64
      %s66 = ssub.s32 %s11, %s18
      %p67 = scmp.eq.s32.totalorder %s66, 0
      %s69 = sadd.s32 %s68, 1
      %s70 = scalar_select %p67, %s68, %s69
      %p73 = pneg %p67
      %p74 = scmp.eq.s32.totalorder %s11, 1
      %p75 = por %p73, %p74
      %p76 = scmp.ne.s32.totalorder %s68, %s71
      %p77 = scmp.eq.s32.totalorder %s11, 0
      %p78 = por %p76, %p77
      %p79 = scmp.ne.s32.totalorder %s68, %s71
      %p80 = scmp.eq.s32.totalorder %s16, 1
      %p81 = por %p79, %p80
      %p82 = scmp.ne.s32.totalorder %s71, %s72
      %p83 = scmp.eq.s32.totalorder %s16, 0
      %p84 = por %p82, %p83
      %p85 = scmp.ne.s32.totalorder %s71, %s72
      %p86 = scmp.eq.s32.totalorder %s17, 1
      %p87 = por %p85, %p86
      %p89 = scmp.ne.s32.totalorder %s72, %s88
      %p90 = scmp.eq.s32.totalorder %s17, 0
      %p91 = por %p89, %p90
      %p92 = scmp.le.s32.totalorder 1, %s11
      %p93 = scmp.lt.s32.totalorder %s11, 3
      %p94 = pnand %p92, %p93
      %p95 = pneg %p94
      // Predicated region
      $region9: #{_conv3x3_nobias.1} parent=5 // pred_check
        _
      $region10: #{_conv3x3_nobias.1} parent=5 // pred_check_branch
        %97 = sbr.rel (%p94) target = $region12
      $region11: #{_conv3x3_nobias.1} parent=5 // pred_region
        %s98 = ssub.s32 %s11, 1
        // Predicated region
        $region13: #{_conv3x3_nobias.1} parent=11 // pred_check
          %p99 = pneg %p58
        $region14: #{_conv3x3_nobias.1} parent=11 // pred_check_branch
          %101 = sbr.rel (%p99) target = $region16
        $region15: #{_conv3x3_nobias.1} parent=11 // pred_region
          _
        $region16: #{_conv3x3_nobias.1} parent=11 // pred_fallthru
          _
      $region12: #{_conv3x3_nobias.1} parent=5 // pred_fallthru
        _
      %p102 = scmp.lt.s32.totalorder %s11, 2
      // Predicated region
      $region17: #{_conv3x3_nobias.1} parent=5 // pred_check
        %p103 = pneg %p102
      $region18: #{_conv3x3_nobias.1} parent=5 // pred_check_branch
        %105 = sbr.rel (%p103) target = $region20
      $region19: #{_conv3x3_nobias.1} parent=5 // pred_region
        // Predicated region
        $region21: #{_conv3x3_nobias.1} parent=19 // pred_check
          %p106 = pneg %p31
        $region22: #{_conv3x3_nobias.1} parent=19 // pred_check_branch
          %108 = sbr.rel (%p106) target = $region24
        $region23: #{_conv3x3_nobias.1} parent=19 // pred_region
          %p109 = scmp.lt.s32.totalorder %s11, 1
          %s110 = scalar_select %p109, %s11, 1
          %s111 = smul.addr %s110, 54
          %s112 = smul.addr %s111, 4
          %s113 = scalar_lea.vmem %s0, %s112
        $region24: #{_conv3x3_nobias.1} parent=19 // pred_fallthru
          _
      $region20: #{_conv3x3_nobias.1} parent=5 // pred_fallthru
        _
      %p114 = scmp.le.s32.totalorder 1, %s11
      %p115 = scmp.lt.s32.totalorder %s11, 3
      %p116 = pnand %p114, %p115
      %p117 = pneg %p116
      // Predicated region
      $region25: #{_conv3x3_nobias.1} parent=5 // pred_check
        _
      $region26: #{_conv3x3_nobias.1} parent=5 // pred_check_branch
        %119 = sbr.rel (%p116) target = $region28
      $region27: #{_conv3x3_nobias.1} parent=5 // pred_region
        %s120 = ssub.s32 %s11, 1
        %p121 = scmp.lt.s32.totalorder %s16, 1
        %s122 = scalar_select %p121, %s16, 1
        %s123 = smul.addr %s122, 54
        %s124 = smul.addr %s123, 4
        %s125 = scalar_lea.vmem %s0, %s124
        %p126 = pneg %p37
        %p127 = pneg %p34
        %p128 = pneg %p58
        %p129 = pneg %p55
        %p130 = pneg %p84
        %p131 = pneg %p81
        %s132 = sand.u32 %s71, 1
        %s133 = scalar_lea.sflag [#allocation3], %s132
        %s134 = sand.u32 %s71, 1
        %s135 = smul.addr %s134, 256
        %s136 = scalar_lea.vmem [#allocation2], %s135
        %p137 = scmp.lt.s32.totalorder %s16, 1
        %s138 = scalar_select %p137, %s16, 1
        %s139 = smul.addr %s138, 54
        %s140 = smul.addr %s139, 4
        %s141 = scalar_lea.vmem %s0, %s140
        %v143 = vld [vmem:[%s141] sm:$0xf]
        %v144 = vld [vmem:[%s141 + $0x4] sm:$0xf]
        %v145 = vld [vmem:[%s141 + $0x8] sm:$0x1]
        %v146 = vld [vmem:[%s141 + $0xc] sm:$0xf]
        %v147 = vld [vmem:[%s141 + $0x10] sm:$0xf]
        %v148 = vld [vmem:[%s141 + $0x14] sm:$0x1]
        %v149 = vld [vmem:[%s141 + $0x18] sm:$0xf]
        %v150 = vld [vmem:[%s141 + $0x1c] sm:$0xf]
        %v151 = vld [vmem:[%s141 + $0x20] sm:$0x1]
        %v152 = vld [vmem:[%s141 + $0x24] sm:$0xf]
        %v153 = vld [vmem:[%s141 + $0x28] sm:$0xf]
        %v154 = vld [vmem:[%s141 + $0x2c] sm:$0x1]
        %v155 = vld [vmem:[%s141 + $0x30] sm:$0xf]
        %v156 = vld [vmem:[%s141 + $0x34] sm:$0xf]
        %v157 = vld [vmem:[%s141 + $0x38] sm:$0x1]
        %v158 = vld [vmem:[%s141 + $0x3c] sm:$0xf]
        %v159 = vld [vmem:[%s141 + $0x40] sm:$0xf]
        %v160 = vld [vmem:[%s141 + $0x44] sm:$0x1]
        %v161 = vld [vmem:[%s141 + $0x48] sm:$0xf]
        %v162 = vld [vmem:[%s141 + $0x4c] sm:$0xf]
        %v163 = vld [vmem:[%s141 + $0x50] sm:$0x1]
        %v164 = vld [vmem:[%s141 + $0x54] sm:$0xf]
        %v165 = vld [vmem:[%s141 + $0x58] sm:$0xf]
        %v166 = vld [vmem:[%s141 + $0x5c] sm:$0x1]
        %v167 = vld [vmem:[%s141 + $0x60] sm:$0xf]
        %v168 = vld [vmem:[%s141 + $0x64] sm:$0xf]
        %v169 = vld [vmem:[%s141 + $0x68] sm:$0x1]
        %v170 = vld [vmem:[%s141 + $0x6c] sm:$0xf]
        %v171 = vld [vmem:[%s141 + $0x70] sm:$0xf]
        %v172 = vld [vmem:[%s141 + $0x74] sm:$0x1]
        %v173 = vld [vmem:[%s141 + $0x78] sm:$0xf]
        %v174 = vld [vmem:[%s141 + $0x7c] sm:$0xf]
        %v175 = vld [vmem:[%s141 + $0x80] sm:$0x1]
        %v176 = vld [vmem:[%s141 + $0x84] sm:$0xf]
        %v177 = vld [vmem:[%s141 + $0x88] sm:$0xf]
        %v178 = vld [vmem:[%s141 + $0x8c] sm:$0x1]
        %v179 = vld [vmem:[%s141 + $0x90] sm:$0xf]
        %v180 = vld [vmem:[%s141 + $0x94] sm:$0xf]
        %v181 = vld [vmem:[%s141 + $0x98] sm:$0x1]
        %v182 = vld [vmem:[%s141 + $0x9c] sm:$0xf]
        %v183 = vld [vmem:[%s141 + $0xa0] sm:$0xf]
        %v184 = vld [vmem:[%s141 + $0xa4] sm:$0x1]
        %v185 = vld [vmem:[%s141 + $0xa8] sm:$0xf]
        %v186 = vld [vmem:[%s141 + $0xac] sm:$0xf]
        %v187 = vld [vmem:[%s141 + $0xb0] sm:$0x1]
        %v188 = vld [vmem:[%s141 + $0xb4] sm:$0xf]
        %v189 = vld [vmem:[%s141 + $0xb8] sm:$0xf]
        %v190 = vld [vmem:[%s141 + $0xbc] sm:$0x1]
        %v191 = vld [vmem:[%s141 + $0xc0] sm:$0xf]
        %v192 = vld [vmem:[%s141 + $0xc4] sm:$0xf]
        %v193 = vld [vmem:[%s141 + $0xc8] sm:$0x1]
        %v194 = vld [vmem:[%s141 + $0xcc] sm:$0xf]
        %v195 = vld [vmem:[%s141 + $0xd0] sm:$0xf]
        %v196 = vld [vmem:[%s141 + $0xd4] sm:$0x1]
        %v229 = vunpack.c.l.b16 %v143
        %v230 = vunpack.c.l.b16 %v144
        %v231 = vunpack.c.l.b16 %v146
        %v232 = vunpack.c.l.b16 %v147
        %v233 = vunpack.c.l.b16 %v149
        %v234 = vunpack.c.l.b16 %v150
        %v235 = vunpack.c.l.b16 %v152
        %v236 = vunpack.c.l.b16 %v153
        %v237 = vunpack.c.l.b16 %v155
        %v238 = vunpack.c.l.b16 %v156
        %v239 = vunpack.c.l.b16 %v158
        %v240 = vunpack.c.l.b16 %v159
        %v241 = vunpack.c.l.b16 %v161
        %v242 = vunpack.c.l.b16 %v162
        %v243 = vunpack.c.l.b16 %v164
        %v244 = vunpack.c.l.b16 %v165
        %v245 = vunpack.c.l.b16 %v167
        %v246 = vunpack.c.l.b16 %v168
        %v247 = vunpack.c.l.b16 %v170
        %v248 = vunpack.c.l.b16 %v171
        %v249 = vunpack.c.l.b16 %v173
        %v250 = vunpack.c.l.b16 %v174
        %v251 = vunpack.c.l.b16 %v176
        %v252 = vunpack.c.l.b16 %v177
        %v253 = vunpack.c.l.b16 %v179
        %v254 = vunpack.c.l.b16 %v180
        %v255 = vunpack.c.l.b16 %v182
        %v256 = vunpack.c.l.b16 %v183
        %v257 = vunpack.c.l.b16 %v185
        %v258 = vunpack.c.l.b16 %v186
        %v259 = vunpack.c.l.b16 %v188
        %v260 = vunpack.c.l.b16 %v189
        %v261 = vpack.c.b16 %v230, %v229
        %v262 = vpack.c.b16 %v232, %v231
        %v263 = vpack.c.b16 %v234, %v233
        %v264 = vpack.c.b16 %v236, %v235
        %v265 = vpack.c.b16 %v238, %v237
        %v266 = vpack.c.b16 %v240, %v239
        %v267 = vpack.c.b16 %v242, %v241
        %v268 = vpack.c.b16 %v244, %v243
        %v269 = vpack.c.b16 %v246, %v245
        %v270 = vpack.c.b16 %v248, %v247
        %v271 = vpack.c.b16 %v250, %v249
        %v272 = vpack.c.b16 %v252, %v251
        %v273 = vpack.c.b16 %v254, %v253
        %v274 = vpack.c.b16 %v256, %v255
        %v275 = vpack.c.b16 %v258, %v257
        %v276 = vpack.c.b16 %v260, %v259
        %v293 = vunpack.c.l.b16 %v145
        %v294 = vunpack.c.l.b16 %v148
        %v295 = vunpack.c.l.b16 %v151
        %v296 = vunpack.c.l.b16 %v154
        %v297 = vunpack.c.l.b16 %v157
        %v298 = vunpack.c.l.b16 %v160
        %v299 = vunpack.c.l.b16 %v163
        %v300 = vunpack.c.l.b16 %v166
        %v301 = vunpack.c.l.b16 %v169
        %v302 = vunpack.c.l.b16 %v172
        %v303 = vunpack.c.l.b16 %v175
        %v304 = vunpack.c.l.b16 %v178
        %v305 = vunpack.c.l.b16 %v181
        %v306 = vunpack.c.l.b16 %v184
        %v307 = vunpack.c.l.b16 %v187
        %v308 = vunpack.c.l.b16 %v190
        %v309 = vpack.c.b16 %v293, %v293
        %v310 = vpack.c.b16 %v294, %v294
        %v311 = vpack.c.b16 %v295, %v295
        %v312 = vpack.c.b16 %v296, %v296
        %v313 = vpack.c.b16 %v297, %v297
        %v314 = vpack.c.b16 %v298, %v298
        %v315 = vpack.c.b16 %v299, %v299
        %v316 = vpack.c.b16 %v300, %v300
        %v317 = vpack.c.b16 %v301, %v301
        %v318 = vpack.c.b16 %v302, %v302
        %v319 = vpack.c.b16 %v303, %v303
        %v320 = vpack.c.b16 %v304, %v304
        %v321 = vpack.c.b16 %v305, %v305
        %v322 = vpack.c.b16 %v306, %v306
        %v323 = vpack.c.b16 %v307, %v307
        %v324 = vpack.c.b16 %v308, %v308
        %vm325 = vsmask.f32 7424
        %v327 = vshrl.u32 %v261, 16
        %v329 = vshll.u32 %v261, 16
        %v331 = vrot.slane %v329, 1
        %v332 = vor.u32 %v327, %v331
        %v334 = vshll.u32 %v309, 16
        %v336 = vrot.slane %v334, 1
        %v337 = vsel %vm325, %v332, %v336
        %v339 = vshrl.u32 %v262, 16
        %v341 = vshll.u32 %v262, 16
        %v343 = vrot.slane %v341, 1
        %v344 = vor.u32 %v339, %v343
        %v346 = vshll.u32 %v310, 16
        %v348 = vrot.slane %v346, 1
        %v349 = vsel %vm325, %v344, %v348
        %v351 = vshrl.u32 %v263, 16
        %v353 = vshll.u32 %v263, 16
        %v355 = vrot.slane %v353, 1
        %v356 = vor.u32 %v351, %v355
        %v358 = vshll.u32 %v311, 16
        %v360 = vrot.slane %v358, 1
        %v361 = vsel %vm325, %v356, %v360
        %v363 = vshrl.u32 %v264, 16
        %v365 = vshll.u32 %v264, 16
        %v367 = vrot.slane %v365, 1
        %v368 = vor.u32 %v363, %v367
        %v370 = vshll.u32 %v312, 16
        %v372 = vrot.slane %v370, 1
        %v373 = vsel %vm325, %v368, %v372
        %v375 = vshrl.u32 %v265, 16
        %v377 = vshll.u32 %v265, 16
        %v379 = vrot.slane %v377, 1
        %v380 = vor.u32 %v375, %v379
        %v382 = vshll.u32 %v313, 16
        %v384 = vrot.slane %v382, 1
        %v385 = vsel %vm325, %v380, %v384
        %v387 = vshrl.u32 %v266, 16
        %v389 = vshll.u32 %v266, 16
        %v391 = vrot.slane %v389, 1
        %v392 = vor.u32 %v387, %v391
        %v394 = vshll.u32 %v314, 16
        %v396 = vrot.slane %v394, 1
        %v397 = vsel %vm325, %v392, %v396
        %v399 = vshrl.u32 %v267, 16
        %v401 = vshll.u32 %v267, 16
        %v403 = vrot.slane %v401, 1
        %v404 = vor.u32 %v399, %v403
        %v406 = vshll.u32 %v315, 16
        %v408 = vrot.slane %v406, 1
        %v409 = vsel %vm325, %v404, %v408
        %v411 = vshrl.u32 %v268, 16
        %v413 = vshll.u32 %v268, 16
        %v415 = vrot.slane %v413, 1
        %v416 = vor.u32 %v411, %v415
        %v418 = vshll.u32 %v316, 16
        %v420 = vrot.slane %v418, 1
        %v421 = vsel %vm325, %v416, %v420
        %v423 = vshrl.u32 %v269, 16
        %v425 = vshll.u32 %v269, 16
        %v427 = vrot.slane %v425, 1
        %v428 = vor.u32 %v423, %v427
        %v430 = vshll.u32 %v317, 16
        %v432 = vrot.slane %v430, 1
        %v433 = vsel %vm325, %v428, %v432
        %v435 = vshrl.u32 %v270, 16
        %v437 = vshll.u32 %v270, 16
        %v439 = vrot.slane %v437, 1
        %v440 = vor.u32 %v435, %v439
        %v442 = vshll.u32 %v318, 16
        %v444 = vrot.slane %v442, 1
        %v445 = vsel %vm325, %v440, %v444
        %v447 = vshrl.u32 %v271, 16
        %v449 = vshll.u32 %v271, 16
        %v451 = vrot.slane %v449, 1
        %v452 = vor.u32 %v447, %v451
        %v454 = vshll.u32 %v319, 16
        %v456 = vrot.slane %v454, 1
        %v457 = vsel %vm325, %v452, %v456
        %v459 = vshrl.u32 %v272, 16
        %v461 = vshll.u32 %v272, 16
        %v463 = vrot.slane %v461, 1
        %v464 = vor.u32 %v459, %v463
        %v466 = vshll.u32 %v320, 16
        %v468 = vrot.slane %v466, 1
        %v469 = vsel %vm325, %v464, %v468
        %v471 = vshrl.u32 %v273, 16
        %v473 = vshll.u32 %v273, 16
        %v475 = vrot.slane %v473, 1
        %v476 = vor.u32 %v471, %v475
        %v478 = vshll.u32 %v321, 16
        %v480 = vrot.slane %v478, 1
        %v481 = vsel %vm325, %v476, %v480
        %v483 = vshrl.u32 %v274, 16
        %v485 = vshll.u32 %v274, 16
        %v487 = vrot.slane %v485, 1
        %v488 = vor.u32 %v483, %v487
        %v490 = vshll.u32 %v322, 16
        %v492 = vrot.slane %v490, 1
        %v493 = vsel %vm325, %v488, %v492
        %v495 = vshrl.u32 %v275, 16
        %v497 = vshll.u32 %v275, 16
        %v499 = vrot.slane %v497, 1
        %v500 = vor.u32 %v495, %v499
        %v502 = vshll.u32 %v323, 16
        %v504 = vrot.slane %v502, 1
        %v505 = vsel %vm325, %v500, %v504
        %v507 = vshrl.u32 %v276, 16
        %v509 = vshll.u32 %v276, 16
        %v511 = vrot.slane %v509, 1
        %v512 = vor.u32 %v507, %v511
        %v514 = vshll.u32 %v324, 16
        %v516 = vrot.slane %v514, 1
        %v517 = vsel %vm325, %v512, %v516
        %518 = vrot.lane.b32.xlu0 %v337, 3
        %v519 = vpop.permute.xlu0 %518
        %520 = vrot.lane.b32.xlu0 %v349, 3
        %v521 = vpop.permute.xlu0 %520
        %522 = vrot.lane.b32.xlu0 %v361, 3
        %v523 = vpop.permute.xlu0 %522
        %524 = vrot.lane.b32.xlu0 %v373, 3
        %v525 = vpop.permute.xlu0 %524
        %526 = vrot.lane.b32.xlu0 %v385, 3
        %v527 = vpop.permute.xlu0 %526
        %528 = vrot.lane.b32.xlu0 %v397, 3
        %v529 = vpop.permute.xlu0 %528
        %530 = vrot.lane.b32.xlu0 %v409, 3
        %v531 = vpop.permute.xlu0 %530
        %532 = vrot.lane.b32.xlu0 %v421, 3
        %v533 = vpop.permute.xlu0 %532
        %534 = vrot.lane.b32.xlu0 %v433, 3
        %v535 = vpop.permute.xlu0 %534
        %536 = vrot.lane.b32.xlu0 %v445, 3
        %v537 = vpop.permute.xlu0 %536
        %538 = vrot.lane.b32.xlu0 %v457, 3
        %v539 = vpop.permute.xlu0 %538
        %540 = vrot.lane.b32.xlu0 %v469, 3
        %v541 = vpop.permute.xlu0 %540
        %542 = vrot.lane.b32.xlu0 %v481, 3
        %v543 = vpop.permute.xlu0 %542
        %544 = vrot.lane.b32.xlu0 %v493, 3
        %v545 = vpop.permute.xlu0 %544
        %546 = vrot.lane.b32.xlu0 %v505, 3
        %v547 = vpop.permute.xlu0 %546
        %548 = vrot.lane.b32.xlu0 %v517, 3
        %v549 = vpop.permute.xlu0 %548
        %vm550 = vcmask 1046528
        %v551 = vrot.slane %v261, 1
        %v552 = vrot.slane %v309, 1
        %v553 = vsel %vm550, %v551, %v552
        %v554 = vrot.slane %v262, 1
        %v555 = vrot.slane %v310, 1
        %v556 = vsel %vm550, %v554, %v555
        %v557 = vrot.slane %v263, 1
        %v558 = vrot.slane %v311, 1
        %v559 = vsel %vm550, %v557, %v558
        %v560 = vrot.slane %v264, 1
        %v561 = vrot.slane %v312, 1
        %v562 = vsel %vm550, %v560, %v561
        %v563 = vrot.slane %v265, 1
        %v564 = vrot.slane %v313, 1
        %v565 = vsel %vm550, %v563, %v564
        %v566 = vrot.slane %v266, 1
        %v567 = vrot.slane %v314, 1
        %v568 = vsel %vm550, %v566, %v567
        %v569 = vrot.slane %v267, 1
        %v570 = vrot.slane %v315, 1
        %v571 = vsel %vm550, %v569, %v570
        %v572 = vrot.slane %v268, 1
        %v573 = vrot.slane %v316, 1
        %v574 = vsel %vm550, %v572, %v573
        %v575 = vrot.slane %v269, 1
        %v576 = vrot.slane %v317, 1
        %v577 = vsel %vm550, %v575, %v576
        %v578 = vrot.slane %v270, 1
        %v579 = vrot.slane %v318, 1
        %v580 = vsel %vm550, %v578, %v579
        %v581 = vrot.slane %v271, 1
        %v582 = vrot.slane %v319, 1
        %v583 = vsel %vm550, %v581, %v582
        %v584 = vrot.slane %v272, 1
        %v585 = vrot.slane %v320, 1
        %v586 = vsel %vm550, %v584, %v585
        %v587 = vrot.slane %v273, 1
        %v588 = vrot.slane %v321, 1
        %v589 = vsel %vm550, %v587, %v588
        %v590 = vrot.slane %v274, 1
        %v591 = vrot.slane %v322, 1
        %v592 = vsel %vm550, %v590, %v591
        %v593 = vrot.slane %v275, 1
        %v594 = vrot.slane %v323, 1
        %v595 = vsel %vm550, %v593, %v594
        %v596 = vrot.slane %v276, 1
        %v597 = vrot.slane %v324, 1
        %v598 = vsel %vm550, %v596, %v597
        %599 = vrot.lane.b32.xlu0 %v553, 6
        %v600 = vpop.permute.xlu0 %599
        %601 = vrot.lane.b32.xlu0 %v556, 6
        %v602 = vpop.permute.xlu0 %601
        %603 = vrot.lane.b32.xlu0 %v559, 6
        %v604 = vpop.permute.xlu0 %603
        %605 = vrot.lane.b32.xlu0 %v562, 6
        %v606 = vpop.permute.xlu0 %605
        %607 = vrot.lane.b32.xlu0 %v565, 6
        %v608 = vpop.permute.xlu0 %607
        %609 = vrot.lane.b32.xlu0 %v568, 6
        %v610 = vpop.permute.xlu0 %609
        %611 = vrot.lane.b32.xlu0 %v571, 6
        %v612 = vpop.permute.xlu0 %611
        %613 = vrot.lane.b32.xlu0 %v574, 6
        %v614 = vpop.permute.xlu0 %613
        %615 = vrot.lane.b32.xlu0 %v577, 6
        %v616 = vpop.permute.xlu0 %615
        %617 = vrot.lane.b32.xlu0 %v580, 6
        %v618 = vpop.permute.xlu0 %617
        %619 = vrot.lane.b32.xlu0 %v583, 6
        %v620 = vpop.permute.xlu0 %619
        %621 = vrot.lane.b32.xlu0 %v586, 6
        %v622 = vpop.permute.xlu0 %621
        %623 = vrot.lane.b32.xlu0 %v589, 6
        %v624 = vpop.permute.xlu0 %623
        %625 = vrot.lane.b32.xlu0 %v592, 6
        %v626 = vpop.permute.xlu0 %625
        %627 = vrot.lane.b32.xlu0 %v595, 6
        %v628 = vpop.permute.xlu0 %627
        %629 = vrot.lane.b32.xlu0 %v598, 6
        %v630 = vpop.permute.xlu0 %629
        %vm631 = vcmask 23552
        %v633 = vsel %vm631, %v261, %v519
        %v635 = vsel %vm631, %v262, %v521
        %v637 = vsel %vm631, %v263, %v523
        %v639 = vsel %vm631, %v264, %v525
        %v641 = vsel %vm631, %v265, %v527
        %v643 = vsel %vm631, %v266, %v529
        %v645 = vsel %vm631, %v267, %v531
        %v647 = vsel %vm631, %v268, %v533
        %v649 = vsel %vm631, %v269, %v535
        %v651 = vsel %vm631, %v270, %v537
        %v653 = vsel %vm631, %v271, %v539
        %v655 = vsel %vm631, %v272, %v541
        %v657 = vsel %vm631, %v273, %v543
        %v659 = vsel %vm631, %v274, %v545
        %v661 = vsel %vm631, %v275, %v547
        %v663 = vsel %vm631, %v276, %v549
        %vm664 = vcmask 48128
        %v666 = vsel %vm664, %v633, %v600
        %v668 = vsel %vm664, %v635, %v602
        %v670 = vsel %vm664, %v637, %v604
        %v672 = vsel %vm664, %v639, %v606
        %v674 = vsel %vm664, %v641, %v608
        %v676 = vsel %vm664, %v643, %v610
        %v678 = vsel %vm664, %v645, %v612
        %v680 = vsel %vm664, %v647, %v614
        %v682 = vsel %vm664, %v649, %v616
        %v684 = vsel %vm664, %v651, %v618
        %v686 = vsel %vm664, %v653, %v620
        %v688 = vsel %vm664, %v655, %v622
        %v690 = vsel %vm664, %v657, %v624
        %v692 = vsel %vm664, %v659, %v626
        %v694 = vsel %vm664, %v661, %v628
        %v696 = vsel %vm664, %v663, %v630
        %v697 = vld [vmem:[%s1] sm:$0xf]
        %v698 = vld [vmem:[%s1 + $0x4] sm:$0x1]
        %v701 = vunpack.c.l.b16 %v191
        %v702 = vunpack.c.l.b16 %v192
        %v703 = vpack.c.b16 %v702, %v701
        %v705 = vunpack.c.l.b16 %v193
        %v706 = vpack.c.b16 %v705, %v705
        %v708 = vshrl.u32 %v703, 16
        %v710 = vshll.u32 %v703, 16
        %v712 = vrot.slane %v710, 1
        %v713 = vor.u32 %v708, %v712
        %v715 = vshll.u32 %v706, 16
        %v717 = vrot.slane %v715, 1
        %v718 = vsel %vm325, %v713, %v717
        %719 = vrot.lane.b32.xlu0 %v718, 3
        %v720 = vpop.permute.xlu0 %719
        %v721 = vrot.slane %v703, 1
        %v722 = vrot.slane %v706, 1
        %v723 = vsel %vm550, %v721, %v722
        %724 = vrot.lane.b32.xlu0 %v723, 6
        %v725 = vpop.permute.xlu0 %724
        %v727 = vsel %vm631, %v703, %v720
        %v729 = vsel %vm664, %v727, %v725
        %s730 = scalar_lea.vmem %s1, 8
        %v731 = vld [vmem:[%s730] sm:$0xf]
        %v732 = vld [vmem:[%s730 + $0x4] sm:$0x1]
        %v735 = vunpack.c.l.b16 %v731
        %v736 = vunpack.c.l.b16 %v732
        %v737 = vpack.c.b16 %v736, %v735
        %vm738 = vcmask 72704
        %v739 = vsel %vm738, %v668, 0
        %v741 = vsel %vm738, %v670, 0
        %v743 = vsel %vm738, %v672, 0
        %v745 = vsel %vm738, %v674, 0
        %v747 = vsel %vm738, %v676, 0
        %v749 = vsel %vm738, %v678, 0
        %v751 = vsel %vm738, %v680, 0
        %v753 = vsel %vm738, %v682, 0
        %v755 = vsel %vm738, %v684, 0
        %v757 = vsel %vm738, %v686, 0
        %v759 = vsel %vm738, %v688, 0
        %v761 = vsel %vm738, %v690, 0
        %v763 = vsel %vm738, %v692, 0
        %v765 = vsel %vm738, %v694, 0
        %v767 = vsel %vm738, %v696, 0
        %v769 = vsel %vm738, %v729, 0
        %vm771 = vcmask 1043456
        %vm772 = vcmask 1044480
        %v773 = vsel %vm771, 4294967295, 65535
        %v774 = vsel %vm772, %v773, 0
        %v776 = vand.u32 %v737, %v774
        %778 = vmatprep.subr.bf16.mxu0 0
        %779 = vmatpush1.bf16.msra.mxu0 %v776
        %780 = vmatprep.subr.bf16.mxu0 0
        %781 = vmatpush1.bf16.msra.mxu0 0
        %782 = vmatprep.subr.bf16.mxu0 0
        %783 = vmatpush1.bf16.msra.mxu0 0
        %784 = vmatprep.subr.bf16.mxu0 0
        %785 = vmatpush1.bf16.msra.mxu0 0
        %786 = vmatprep.subr.bf16.mxu0 0
        %787 = vmatpush1.bf16.msra.mxu0 0
        %788 = vmatprep.subr.bf16.mxu0 0
        %789 = vmatpush1.bf16.msra.mxu0 0
        %790 = vmatprep.subr.bf16.mxu0 0
        %791 = vmatpush1.bf16.msra.mxu0 0
        %792 = vmatprep.subr.bf16.mxu0 0
        %793 = vmatpush1.bf16.msra.mxu0 0
        %794 = vmatprep.subr.bf16.mxu0 0
        %795 = vmatpush1.bf16.msra.mxu0 0
        %796 = vmatprep.subr.bf16.mxu0 0
        %797 = vmatpush1.bf16.msra.mxu0 0
        %798 = vmatprep.subr.bf16.mxu0 0
        %799 = vmatpush1.bf16.msra.mxu0 0
        %800 = vmatprep.subr.bf16.mxu0 0
        %801 = vmatpush1.bf16.msra.mxu0 0
        %802 = vmatprep.subr.bf16.mxu0 0
        %803 = vmatpush1.bf16.msra.mxu0 0
        %804 = vmatprep.subr.bf16.mxu0 0
        %805 = vmatpush1.bf16.msra.mxu0 0
        %806 = vmatprep.subr.bf16.mxu0 0
        %807 = vmatpush1.bf16.msra.mxu0 0
        %808 = vmatprep.subr.bf16.mxu0 0
        %809 = vmatpush1.bf16.msra.mxu0 0
        %810 = vmatprep.mubr.bf16.mxu0 0
        %811 = vmatmul.mubr.bf16.gmra.mrb[0].mxu0 %v739
        %v812 = vpop.f32.mrb[0].mxu0
        %v813 = vadd.f32 0.0, %v812
        %v814 = vpop.f32.mrb[0].mxu0
        %v815 = vpop.f32.mrb[0].mxu0
        %v816 = vadd.f32 0.0, %v815
        %v817 = vpop.f32.mrb[0].mxu0
        %818 = vmatprep.mubr.bf16.mxu0 0
        %819 = vmatmul.mubr.bf16.gmra.mrb[0].mxu0 %v741
        %v820 = vpop.f32.mrb[0].mxu0
        %v821 = vadd.f32 0.0, %v820
        %v822 = vpop.f32.mrb[0].mxu0
        %v823 = vpop.f32.mrb[0].mxu0
        %v824 = vadd.f32 0.0, %v823
        %v825 = vpop.f32.mrb[0].mxu0
        %826 = vmatprep.mubr.bf16.mxu0 0
        %827 = vmatmul.mubr.bf16.gmra.mrb[0].mxu0 %v743
        %v828 = vpop.f32.mrb[0].mxu0
        %v829 = vadd.f32 0.0, %v828
        %v830 = vpop.f32.mrb[0].mxu0
        %v831 = vpop.f32.mrb[0].mxu0
        %v832 = vadd.f32 0.0, %v831
        %v833 = vpop.f32.mrb[0].mxu0
        %834 = vmatprep.mubr.bf16.mxu0 0
        %835 = vmatmul.mubr.bf16.gmra.mrb[0].mxu0 %v745
        %v836 = vpop.f32.mrb[0].mxu0
        %v837 = vadd.f32 0.0, %v836
        %v838 = vpop.f32.mrb[0].mxu0
        %v839 = vpop.f32.mrb[0].mxu0
        %v840 = vadd.f32 0.0, %v839
        %v841 = vpop.f32.mrb[0].mxu0
        %842 = vmatprep.mubr.bf16.mxu0 0
        %843 = vmatmul.mubr.bf16.gmra.mrb[0].mxu0 %v747
        %v844 = vpop.f32.mrb[0].mxu0
        %v845 = vadd.f32 0.0, %v844
        %v846 = vpop.f32.mrb[0].mxu0
        %v847 = vpop.f32.mrb[0].mxu0
        %v848 = vadd.f32 0.0, %v847
        %v849 = vpop.f32.mrb[0].mxu0
        %850 = vmatprep.mubr.bf16.mxu0 0
        %851 = vmatmul.mubr.bf16.gmra.mrb[0].mxu0 %v749
        %v852 = vpop.f32.mrb[0].mxu0
        %v853 = vadd.f32 0.0, %v852
        %v854 = vpop.f32.mrb[0].mxu0
        %v855 = vpop.f32.mrb[0].mxu0
        %v856 = vadd.f32 0.0, %v855
        %v857 = vpop.f32.mrb[0].mxu0
        %858 = vmatprep.mubr.bf16.mxu0 0
        %859 = vmatmul.mubr.bf16.gmra.mrb[0].mxu0 %v751
        %v860 = vpop.f32.mrb[0].mxu0
        %v861 = vadd.f32 0.0, %v860
        %v862 = vpop.f32.mrb[0].mxu0
        %v863 = vpop.f32.mrb[0].mxu0
        %v864 = vadd.f32 0.0, %v863
        %v865 = vpop.f32.mrb[0].mxu0
        %866 = vmatprep.mubr.bf16.mxu0 0
        %867 = vmatmul.mubr.bf16.gmra.mrb[0].mxu0 %v753
        %v868 = vpop.f32.mrb[0].mxu0
        %v869 = vadd.f32 0.0, %v868
        %v870 = vpop.f32.mrb[0].mxu0
        %v871 = vpop.f32.mrb[0].mxu0
        %v872 = vadd.f32 0.0, %v871
        %v873 = vpop.f32.mrb[0].mxu0
        %874 = vmatprep.mubr.bf16.mxu0 0
        %875 = vmatmul.mubr.bf16.gmra.mrb[0].mxu0 %v755
        %v876 = vpop.f32.mrb[0].mxu0
        %v877 = vadd.f32 0.0, %v876
        %v878 = vpop.f32.mrb[0].mxu0
        %v879 = vpop.f32.mrb[0].mxu0
        %v880 = vadd.f32 0.0, %v879
        %v881 = vpop.f32.mrb[0].mxu0
        %882 = vmatprep.mubr.bf16.mxu0 0
        %883 = vmatmul.mubr.bf16.gmra.mrb[0].mxu0 %v757
        %v884 = vpop.f32.mrb[0].mxu0
        %v885 = vadd.f32 0.0, %v884
        %v886 = vpop.f32.mrb[0].mxu0
        %v887 = vpop.f32.mrb[0].mxu0
        %v888 = vadd.f32 0.0, %v887
        %v889 = vpop.f32.mrb[0].mxu0
        %890 = vmatprep.mubr.bf16.mxu0 0
        %891 = vmatmul.mubr.bf16.gmra.mrb[0].mxu0 %v759
        %v892 = vpop.f32.mrb[0].mxu0
        %v893 = vadd.f32 0.0, %v892
        %v894 = vpop.f32.mrb[0].mxu0
        %v895 = vpop.f32.mrb[0].mxu0
        %v896 = vadd.f32 0.0, %v895
        %v897 = vpop.f32.mrb[0].mxu0
        %898 = vmatprep.mubr.bf16.mxu0 0
        %899 = vmatmul.mubr.bf16.gmra.mrb[0].mxu0 %v761
        %v900 = vpop.f32.mrb[0].mxu0
        %v901 = vadd.f32 0.0, %v900
        %v902 = vpop.f32.mrb[0].mxu0
        %v903 = vpop.f32.mrb[0].mxu0
        %v904 = vadd.f32 0.0, %v903
        %v905 = vpop.f32.mrb[0].mxu0
        %906 = vmatprep.mubr.bf16.mxu0 0
        %907 = vmatmul.mubr.bf16.gmra.mrb[0].mxu0 %v763
        %v908 = vpop.f32.mrb[0].mxu0
        %v909 = vadd.f32 0.0, %v908
        %v910 = vpop.f32.mrb[0].mxu0
        %v911 = vpop.f32.mrb[0].mxu0
        %v912 = vadd.f32 0.0, %v911
        %v913 = vpop.f32.mrb[0].mxu0
        %914 = vmatprep.mubr.bf16.mxu0 0
        %915 = vmatmul.mubr.bf16.gmra.mrb[0].mxu0 %v765
        %v916 = vpop.f32.mrb[0].mxu0
        %v917 = vadd.f32 0.0, %v916
        %v918 = vpop.f32.mrb[0].mxu0
        %v919 = vpop.f32.mrb[0].mxu0
        %v920 = vadd.f32 0.0, %v919
        %v921 = vpop.f32.mrb[0].mxu0
        %922 = vmatprep.mubr.bf16.mxu0 0
        %923 = vmatmul.mubr.bf16.gmra.mrb[0].mxu0 %v767
        %v924 = vpop.f32.mrb[0].mxu0
        %v925 = vadd.f32 0.0, %v924
        %v926 = vpop.f32.mrb[0].mxu0
        %v927 = vpop.f32.mrb[0].mxu0
        %v928 = vadd.f32 0.0, %v927
        %v929 = vpop.f32.mrb[0].mxu0
        %930 = vmatprep.mubr.bf16.mxu0 0
        %931 = vmatmul.mubr.bf16.gmra.mrb[0].mxu0 %v769
        %v932 = vpop.f32.mrb[0].mxu0
        %v933 = vadd.f32 0.0, %v932
        %v934 = vpop.f32.mrb[0].mxu0
        %v935 = vpop.f32.mrb[0].mxu0
        %v936 = vadd.f32 0.0, %v935
        %v937 = vpop.f32.mrb[0].mxu0
        %938 = vdwg.mxu0
        %v941 = vunpack.c.l.b16 %v697
        %v942 = vunpack.c.l.b16 %v698
        %v943 = vpack.c.b16 %v942, %v941
        %v944 = vsel %vm738, %v666, 0
        %v947 = vand.u32 %v943, %v774
        %949 = vmatprep.subr.bf16.mxu0 0
        %950 = vmatpush1.bf16.msra.mxu0 %v947
        %951 = vmatprep.subr.bf16.mxu0 0
        %952 = vmatpush1.bf16.msra.mxu0 0
        %953 = vmatprep.subr.bf16.mxu0 0
        %954 = vmatpush1.bf16.msra.mxu0 0
        %955 = vmatprep.subr.bf16.mxu0 0
        %956 = vmatpush1.bf16.msra.mxu0 0
        %957 = vmatprep.subr.bf16.mxu0 0
        %958 = vmatpush1.bf16.msra.mxu0 0
        %959 = vmatprep.subr.bf16.mxu0 0
        %960 = vmatpush1.bf16.msra.mxu0 0
        %961 = vmatprep.subr.bf16.mxu0 0
        %962 = vmatpush1.bf16.msra.mxu0 0
        %963 = vmatprep.subr.bf16.mxu0 0
        %964 = vmatpush1.bf16.msra.mxu0 0
        %965 = vmatprep.subr.bf16.mxu0 0
        %966 = vmatpush1.bf16.msra.mxu0 0
        %967 = vmatprep.subr.bf16.mxu0 0
        %968 = vmatpush1.bf16.msra.mxu0 0
        %969 = vmatprep.subr.bf16.mxu0 0
        %970 = vmatpush1.bf16.msra.mxu0 0
        %971 = vmatprep.subr.bf16.mxu0 0
        %972 = vmatpush1.bf16.msra.mxu0 0
        %973 = vmatprep.subr.bf16.mxu0 0
        %974 = vmatpush1.bf16.msra.mxu0 0
        %975 = vmatprep.subr.bf16.mxu0 0
        %976 = vmatpush1.bf16.msra.mxu0 0
        %977 = vmatprep.subr.bf16.mxu0 0
        %978 = vmatpush1.bf16.msra.mxu0 0
        %979 = vmatprep.subr.bf16.mxu0 0
        %980 = vmatpush1.bf16.msra.mxu0 0
        %981 = vmatprep.mubr.bf16.mxu0 0
        %982 = vmatmul.mubr.bf16.gmra.mrb[0].mxu0 %v944
        %v983 = vpop.f32.mrb[0].mxu0
        %v984 = vadd.f32 %v813, %v983
        %v985 = vpop.f32.mrb[0].mxu0
        %v986 = vpop.f32.mrb[0].mxu0
        %v987 = vadd.f32 %v816, %v986
        %v988 = vpop.f32.mrb[0].mxu0
        %989 = vmatprep.mubr.bf16.mxu0 0
        %990 = vmatmul.mubr.bf16.gmra.mrb[0].mxu0 %v739
        %v991 = vpop.f32.mrb[0].mxu0
        %v992 = vadd.f32 %v821, %v991
        %v993 = vpop.f32.mrb[0].mxu0
        %v994 = vpop.f32.mrb[0].mxu0
        %v995 = vadd.f32 %v824, %v994
        %v996 = vpop.f32.mrb[0].mxu0
        %997 = vmatprep.mubr.bf16.mxu0 0
        %998 = vmatmul.mubr.bf16.gmra.mrb[0].mxu0 %v741
        %v999 = vpop.f32.mrb[0].mxu0
        %v1000 = vadd.f32 %v829, %v999
        %v1001 = vpop.f32.mrb[0].mxu0
        %v1002 = vpop.f32.mrb[0].mxu0
        %v1003 = vadd.f32 %v832, %v1002
        %v1004 = vpop.f32.mrb[0].mxu0
        %1005 = vmatprep.mubr.bf16.mxu0 0
        %1006 = vmatmul.mubr.bf16.gmra.mrb[0].mxu0 %v743
        %v1007 = vpop.f32.mrb[0].mxu0
        %v1008 = vadd.f32 %v837, %v1007
        %v1009 = vpop.f32.mrb[0].mxu0
        %v1010 = vpop.f32.mrb[0].mxu0
        %v1011 = vadd.f32 %v840, %v1010
        %v1012 = vpop.f32.mrb[0].mxu0
        %1013 = vmatprep.mubr.bf16.mxu0 0
        %1014 = vmatmul.mubr.bf16.gmra.mrb[0].mxu0 %v745
        %v1015 = vpop.f32.mrb[0].mxu0
        %v1016 = vadd.f32 %v845, %v1015
        %v1017 = vpop.f32.mrb[0].mxu0
        %v1018 = vpop.f32.mrb[0].mxu0
        %v1019 = vadd.f32 %v848, %v1018
        %v1020 = vpop.f32.mrb[0].mxu0
        %1021 = vmatprep.mubr.bf16.mxu0 0
        %1022 = vmatmul.mubr.bf16.gmra.mrb[0].mxu0 %v747
        %v1023 = vpop.f32.mrb[0].mxu0
        %v1024 = vadd.f32 %v853, %v1023
        %v1025 = vpop.f32.mrb[0].mxu0
        %v1026 = vpop.f32.mrb[0].mxu0
        %v1027 = vadd.f32 %v856, %v1026
        %v1028 = vpop.f32.mrb[0].mxu0
        %1029 = vmatprep.mubr.bf16.mxu0 0
        %1030 = vmatmul.mubr.bf16.gmra.mrb[0].mxu0 %v749
        %v1031 = vpop.f32.mrb[0].mxu0
        %v1032 = vadd.f32 %v861, %v1031
        %v1033 = vpop.f32.mrb[0].mxu0
        %v1034 = vpop.f32.mrb[0].mxu0
        %v1035 = vadd.f32 %v864, %v1034
        %v1036 = vpop.f32.mrb[0].mxu0
        %1037 = vmatprep.mubr.bf16.mxu0 0
        %1038 = vmatmul.mubr.bf16.gmra.mrb[0].mxu0 %v751
        %v1039 = vpop.f32.mrb[0].mxu0
        %v1040 = vadd.f32 %v869, %v1039
        %v1041 = vpop.f32.mrb[0].mxu0
        %v1042 = vpop.f32.mrb[0].mxu0
        %v1043 = vadd.f32 %v872, %v1042
        %v1044 = vpop.f32.mrb[0].mxu0
        %1045 = vmatprep.mubr.bf16.mxu0 0
        %1046 = vmatmul.mubr.bf16.gmra.mrb[0].mxu0 %v753
        %v1047 = vpop.f32.mrb[0].mxu0
        %v1048 = vadd.f32 %v877, %v1047
        %v1049 = vpop.f32.mrb[0].mxu0
        %v1050 = vpop.f32.mrb[0].mxu0
        %v1051 = vadd.f32 %v880, %v1050
        %v1052 = vpop.f32.mrb[0].mxu0
        %1053 = vmatprep.mubr.bf16.mxu0 0
        %1054 = vmatmul.mubr.bf16.gmra.mrb[0].mxu0 %v755
        %v1055 = vpop.f32.mrb[0].mxu0
        %v1056 = vadd.f32 %v885, %v1055
        %v1057 = vpop.f32.mrb[0].mxu0
        %v1058 = vpop.f32.mrb[0].mxu0
        %v1059 = vadd.f32 %v888, %v1058
        %v1060 = vpop.f32.mrb[0].mxu0
        %1061 = vmatprep.mubr.bf16.mxu0 0
        %1062 = vmatmul.mubr.bf16.gmra.mrb[0].mxu0 %v757
        %v1063 = vpop.f32.mrb[0].mxu0
        %v1064 = vadd.f32 %v893, %v1063
        %v1065 = vpop.f32.mrb[0].mxu0
        %v1066 = vpop.f32.mrb[0].mxu0
        %v1067 = vadd.f32 %v896, %v1066
        %v1068 = vpop.f32.mrb[0].mxu0
        %1069 = vmatprep.mubr.bf16.mxu0 0
        %1070 = vmatmul.mubr.bf16.gmra.mrb[0].mxu0 %v759
        %v1071 = vpop.f32.mrb[0].mxu0
        %v1072 = vadd.f32 %v901, %v1071
        %v1073 = vpop.f32.mrb[0].mxu0
        %v1074 = vpop.f32.mrb[0].mxu0
        %v1075 = vadd.f32 %v904, %v1074
        %v1076 = vpop.f32.mrb[0].mxu0
        %1077 = vmatprep.mubr.bf16.mxu0 0
        %1078 = vmatmul.mubr.bf16.gmra.mrb[0].mxu0 %v761
        %v1079 = vpop.f32.mrb[0].mxu0
        %v1080 = vadd.f32 %v909, %v1079
        %v1081 = vpop.f32.mrb[0].mxu0
        %v1082 = vpop.f32.mrb[0].mxu0
        %v1083 = vadd.f32 %v912, %v1082
        %v1084 = vpop.f32.mrb[0].mxu0
        %1085 = vmatprep.mubr.bf16.mxu0 0
        %1086 = vmatmul.mubr.bf16.gmra.mrb[0].mxu0 %v763
        %v1087 = vpop.f32.mrb[0].mxu0
        %v1088 = vadd.f32 %v917, %v1087
        %v1089 = vpop.f32.mrb[0].mxu0
        %v1090 = vpop.f32.mrb[0].mxu0
        %v1091 = vadd.f32 %v920, %v1090
        %v1092 = vpop.f32.mrb[0].mxu0
        %1093 = vmatprep.mubr.bf16.mxu0 0
        %1094 = vmatmul.mubr.bf16.gmra.mrb[0].mxu0 %v765
        %v1095 = vpop.f32.mrb[0].mxu0
        %v1096 = vadd.f32 %v925, %v1095
        %v1097 = vpop.f32.mrb[0].mxu0
        %v1098 = vpop.f32.mrb[0].mxu0
        %v1099 = vadd.f32 %v928, %v1098
        %v1100 = vpop.f32.mrb[0].mxu0
        %1101 = vmatprep.mubr.bf16.mxu0 0
        %1102 = vmatmul.mubr.bf16.gmra.mrb[0].mxu0 %v767
        %v1103 = vpop.f32.mrb[0].mxu0
        %v1104 = vadd.f32 %v933, %v1103
        %v1105 = vpop.f32.mrb[0].mxu0
        %v1106 = vpop.f32.mrb[0].mxu0
        %v1107 = vadd.f32 %v936, %v1106
        %v1108 = vpop.f32.mrb[0].mxu0
        %1109 = vdwg.mxu0
        %v1112 = vunpack.c.l.b16 %v194
        %v1113 = vunpack.c.l.b16 %v195
        %v1114 = vpack.c.b16 %v1113, %v1112
        %v1116 = vunpack.c.l.b16 %v196
        %v1117 = vpack.c.b16 %v1116, %v1116
        %v1119 = vshrl.u32 %v1114, 16
        %v1121 = vshll.u32 %v1114, 16
        %v1123 = vrot.slane %v1121, 1
        %v1124 = vor.u32 %v1119, %v1123
        %v1126 = vshll.u32 %v1117, 16
        %v1128 = vrot.slane %v1126, 1
        %v1129 = vsel %vm325, %v1124, %v1128
        %1130 = vrot.lane.b32.xlu0 %v1129, 3
        %v1131 = vpop.permute.xlu0 %1130
        %v1132 = vrot.slane %v1114, 1
        %v1133 = vrot.slane %v1117, 1
        %v1134 = vsel %vm550, %v1132, %v1133
        %1135 = vrot.lane.b32.xlu0 %v1134, 6
        %v1136 = vpop.permute.xlu0 %1135
        %v1138 = vsel %vm631, %v1114, %v1131
        %v1140 = vsel %vm664, %v1138, %v1136
        %s1141 = scalar_lea.vmem %s1, 16
        %v1142 = vld [vmem:[%s1141] sm:$0xf]
        %v1143 = vld [vmem:[%s1141 + $0x4] sm:$0x1]
        %v1146 = vunpack.c.l.b16 %v1142
        %v1147 = vunpack.c.l.b16 %v1143
        %v1148 = vpack.c.b16 %v1147, %v1146
        %v1149 = vsel %vm738, %v1140, 0
        %v1152 = vand.u32 %v1148, %v774
        %1154 = vmatprep.subr.bf16.mxu0 0
        %1155 = vmatpush1.bf16.msra.mxu0 %v1152
        %1156 = vmatprep.subr.bf16.mxu0 0
        %1157 = vmatpush1.bf16.msra.mxu0 0
        %1158 = vmatprep.subr.bf16.mxu0 0
        %1159 = vmatpush1.bf16.msra.mxu0 0
        %1160 = vmatprep.subr.bf16.mxu0 0
        %1161 = vmatpush1.bf16.msra.mxu0 0
        %1162 = vmatprep.subr.bf16.mxu0 0
        %1163 = vmatpush1.bf16.msra.mxu0 0
        %1164 = vmatprep.subr.bf16.mxu0 0
        %1165 = vmatpush1.bf16.msra.mxu0 0
        %1166 = vmatprep.subr.bf16.mxu0 0
        %1167 = vmatpush1.bf16.msra.mxu0 0
        %1168 = vmatprep.subr.bf16.mxu0 0
        %1169 = vmatpush1.bf16.msra.mxu0 0
        %1170 = vmatprep.subr.bf16.mxu0 0
        %1171 = vmatpush1.bf16.msra.mxu0 0
        %1172 = vmatprep.subr.bf16.mxu0 0
        %1173 = vmatpush1.bf16.msra.mxu0 0
        %1174 = vmatprep.subr.bf16.mxu0 0
        %1175 = vmatpush1.bf16.msra.mxu0 0
        %1176 = vmatprep.subr.bf16.mxu0 0
        %1177 = vmatpush1.bf16.msra.mxu0 0
        %1178 = vmatprep.subr.bf16.mxu0 0
        %1179 = vmatpush1.bf16.msra.mxu0 0
        %1180 = vmatprep.subr.bf16.mxu0 0
        %1181 = vmatpush1.bf16.msra.mxu0 0
        %1182 = vmatprep.subr.bf16.mxu0 0
        %1183 = vmatpush1.bf16.msra.mxu0 0
        %1184 = vmatprep.subr.bf16.mxu0 0
        %1185 = vmatpush1.bf16.msra.mxu0 0
        %1186 = vmatprep.mubr.bf16.mxu0 0
        %1187 = vmatmul.mubr.bf16.gmra.mrb[0].mxu0 %v741
        %v1188 = vpop.f32.mrb[0].mxu0
        %v1189 = vadd.f32 0.0, %v1188
        %v1190 = vpop.f32.mrb[0].mxu0
        %v1191 = vpop.f32.mrb[0].mxu0
        %v1192 = vadd.f32 0.0, %v1191
        %v1193 = vpop.f32.mrb[0].mxu0
        %1194 = vmatprep.mubr.bf16.mxu0 0
        %1195 = vmatmul.mubr.bf16.gmra.mrb[0].mxu0 %v743
        %v1196 = vpop.f32.mrb[0].mxu0
        %v1197 = vadd.f32 0.0, %v1196
        %v1198 = vpop.f32.mrb[0].mxu0
        %v1199 = vpop.f32.mrb[0].mxu0
        %v1200 = vadd.f32 0.0, %v1199
        %v1201 = vpop.f32.mrb[0].mxu0
        %1202 = vmatprep.mubr.bf16.mxu0 0
        %1203 = vmatmul.mubr.bf16.gmra.mrb[0].mxu0 %v745
        %v1204 = vpop.f32.mrb[0].mxu0
        %v1205 = vadd.f32 0.0, %v1204
        %v1206 = vpop.f32.mrb[0].mxu0
        %v1207 = vpop.f32.mrb[0].mxu0
        %v1208 = vadd.f32 0.0, %v1207
        %v1209 = vpop.f32.mrb[0].mxu0
        %1210 = vmatprep.mubr.bf16.mxu0 0
        %1211 = vmatmul.mubr.bf16.gmra.mrb[0].mxu0 %v747
        %v1212 = vpop.f32.mrb[0].mxu0
        %v1213 = vadd.f32 0.0, %v1212
        %v1214 = vpop.f32.mrb[0].mxu0
        %v1215 = vpop.f32.mrb[0].mxu0
        %v1216 = vadd.f32 0.0, %v1215
        %v1217 = vpop.f32.mrb[0].mxu0
        %1218 = vmatprep.mubr.bf16.mxu0 0
        %1219 = vmatmul.mubr.bf16.gmra.mrb[0].mxu0 %v749
        %v1220 = vpop.f32.mrb[0].mxu0
        %v1221 = vadd.f32 0.0, %v1220
        %v1222 = vpop.f32.mrb[0].mxu0
        %v1223 = vpop.f32.mrb[0].mxu0
        %v1224 = vadd.f32 0.0, %v1223
        %v1225 = vpop.f32.mrb[0].mxu0
        %1226 = vmatprep.mubr.bf16.mxu0 0
        %1227 = vmatmul.mubr.bf16.gmra.mrb[0].mxu0 %v751
        %v1228 = vpop.f32.mrb[0].mxu0
        %v1229 = vadd.f32 0.0, %v1228
        %v1230 = vpop.f32.mrb[0].mxu0
        %v1231 = vpop.f32.mrb[0].mxu0
        %v1232 = vadd.f32 0.0, %v1231
        %v1233 = vpop.f32.mrb[0].mxu0
        %1234 = vmatprep.mubr.bf16.mxu0 0
        %1235 = vmatmul.mubr.bf16.gmra.mrb[0].mxu0 %v753
        %v1236 = vpop.f32.mrb[0].mxu0
        %v1237 = vadd.f32 0.0, %v1236
        %v1238 = vpop.f32.mrb[0].mxu0
        %v1239 = vpop.f32.mrb[0].mxu0
        %v1240 = vadd.f32 0.0, %v1239
        %v1241 = vpop.f32.mrb[0].mxu0
        %1242 = vmatprep.mubr.bf16.mxu0 0
        %1243 = vmatmul.mubr.bf16.gmra.mrb[0].mxu0 %v755
        %v1244 = vpop.f32.mrb[0].mxu0
        %v1245 = vadd.f32 0.0, %v1244
        %v1246 = vpop.f32.mrb[0].mxu0
        %v1247 = vpop.f32.mrb[0].mxu0
        %v1248 = vadd.f32 0.0, %v1247
        %v1249 = vpop.f32.mrb[0].mxu0
        %1250 = vmatprep.mubr.bf16.mxu0 0
        %1251 = vmatmul.mubr.bf16.gmra.mrb[0].mxu0 %v757
        %v1252 = vpop.f32.mrb[0].mxu0
        %v1253 = vadd.f32 0.0, %v1252
        %v1254 = vpop.f32.mrb[0].mxu0
        %v1255 = vpop.f32.mrb[0].mxu0
        %v1256 = vadd.f32 0.0, %v1255
        %v1257 = vpop.f32.mrb[0].mxu0
        %1258 = vmatprep.mubr.bf16.mxu0 0
        %1259 = vmatmul.mubr.bf16.gmra.mrb[0].mxu0 %v759
        %v1260 = vpop.f32.mrb[0].mxu0
        %v1261 = vadd.f32 0.0, %v1260
        %v1262 = vpop.f32.mrb[0].mxu0
        %v1263 = vpop.f32.mrb[0].mxu0
        %v1264 = vadd.f32 0.0, %v1263
        %v1265 = vpop.f32.mrb[0].mxu0
        %1266 = vmatprep.mubr.bf16.mxu0 0
        %1267 = vmatmul.mubr.bf16.gmra.mrb[0].mxu0 %v761
        %v1268 = vpop.f32.mrb[0].mxu0
        %v1269 = vadd.f32 0.0, %v1268
        %v1270 = vpop.f32.mrb[0].mxu0
        %v1271 = vpop.f32.mrb[0].mxu0
        %v1272 = vadd.f32 0.0, %v1271
        %v1273 = vpop.f32.mrb[0].mxu0
        %1274 = vmatprep.mubr.bf16.mxu0 0
        %1275 = vmatmul.mubr.bf16.gmra.mrb[0].mxu0 %v763
        %v1276 = vpop.f32.mrb[0].mxu0
        %v1277 = vadd.f32 0.0, %v1276
        %v1278 = vpop.f32.mrb[0].mxu0
        %v1279 = vpop.f32.mrb[0].mxu0
        %v1280 = vadd.f32 0.0, %v1279
        %v1281 = vpop.f32.mrb[0].mxu0
        %1282 = vmatprep.mubr.bf16.mxu0 0
        %1283 = vmatmul.mubr.bf16.gmra.mrb[0].mxu0 %v765
        %v1284 = vpop.f32.mrb[0].mxu0
        %v1285 = vadd.f32 0.0, %v1284
        %v1286 = vpop.f32.mrb[0].mxu0
        %v1287 = vpop.f32.mrb[0].mxu0
        %v1288 = vadd.f32 0.0, %v1287
        %v1289 = vpop.f32.mrb[0].mxu0
        %1290 = vmatprep.mubr.bf16.mxu0 0
        %1291 = vmatmul.mubr.bf16.gmra.mrb[0].mxu0 %v767
        %v1292 = vpop.f32.mrb[0].mxu0
        %v1293 = vadd.f32 0.0, %v1292
        %v1294 = vpop.f32.mrb[0].mxu0
        %v1295 = vpop.f32.mrb[0].mxu0
        %v1296 = vadd.f32 0.0, %v1295
        %v1297 = vpop.f32.mrb[0].mxu0
        %1298 = vmatprep.mubr.bf16.mxu0 0
        %1299 = vmatmul.mubr.bf16.gmra.mrb[0].mxu0 %v769
        %v1300 = vpop.f32.mrb[0].mxu0
        %v1301 = vadd.f32 0.0, %v1300
        %v1302 = vpop.f32.mrb[0].mxu0
        %v1303 = vpop.f32.mrb[0].mxu0
        %v1304 = vadd.f32 0.0, %v1303
        %v1305 = vpop.f32.mrb[0].mxu0
        %1306 = vmatprep.mubr.bf16.mxu0 0
        %1307 = vmatmul.mubr.bf16.gmra.mrb[0].mxu0 %v1149
        %v1308 = vpop.f32.mrb[0].mxu0
        %v1309 = vadd.f32 0.0, %v1308
        %v1310 = vpop.f32.mrb[0].mxu0
        %v1311 = vpop.f32.mrb[0].mxu0
        %v1312 = vadd.f32 0.0, %v1311
        %v1313 = vpop.f32.mrb[0].mxu0
        %1314 = vdwg.mxu0
        %v1315 = vadd.f32 %v984, %v1189
        %v1316 = vadd.f32 %v987, %v1192
        %v1317 = vadd.f32 %v992, %v1197
        %v1318 = vadd.f32 %v995, %v1200
        %v1319 = vadd.f32 %v1000, %v1205
        %v1320 = vadd.f32 %v1003, %v1208
        %v1321 = vadd.f32 %v1008, %v1213
        %v1322 = vadd.f32 %v1011, %v1216
        %v1323 = vadd.f32 %v1016, %v1221
        %v1324 = vadd.f32 %v1019, %v1224
        %v1325 = vadd.f32 %v1024, %v1229
        %v1326 = vadd.f32 %v1027, %v1232
        %v1327 = vadd.f32 %v1032, %v1237
        %v1328 = vadd.f32 %v1035, %v1240
        %v1329 = vadd.f32 %v1040, %v1245
        %v1330 = vadd.f32 %v1043, %v1248
        %v1331 = vadd.f32 %v1048, %v1253
        %v1332 = vadd.f32 %v1051, %v1256
        %v1333 = vadd.f32 %v1056, %v1261
        %v1334 = vadd.f32 %v1059, %v1264
        %v1335 = vadd.f32 %v1064, %v1269
        %v1336 = vadd.f32 %v1067, %v1272
        %v1337 = vadd.f32 %v1072, %v1277
        %v1338 = vadd.f32 %v1075, %v1280
        %v1339 = vadd.f32 %v1080, %v1285
        %v1340 = vadd.f32 %v1083, %v1288
        %v1341 = vadd.f32 %v1088, %v1293
        %v1342 = vadd.f32 %v1091, %v1296
        %v1343 = vadd.f32 %v1096, %v1301
        %v1344 = vadd.f32 %v1099, %v1304
        %v1345 = vadd.f32 %v1104, %v1309
        %v1346 = vadd.f32 %v1107, %v1312
        %vm1347 = vcmask 261120
        %1348 = vst.msk [vmem:[%s136] sm:$0xff] %vm1347, %v1315
        %1349 = vst.msk [vmem:[%s136 + $0x8] sm:$0xff] %vm1347, %v1316
        %1350 = vst.msk [vmem:[%s136 + $0x10] sm:$0xff] %vm1347, %v1317
        %1351 = vst.msk [vmem:[%s136 + $0x18] sm:$0xff] %vm1347, %v1318
        %1352 = vst.msk [vmem:[%s136 + $0x20] sm:$0xff] %vm1347, %v1319
        %1353 = vst.msk [vmem:[%s136 + $0x28] sm:$0xff] %vm1347, %v1320
        %1354 = vst.msk [vmem:[%s136 + $0x30] sm:$0xff] %vm1347, %v1321
        %1355 = vst.msk [vmem:[%s136 + $0x38] sm:$0xff] %vm1347, %v1322
        %1356 = vst.msk [vmem:[%s136 + $0x40] sm:$0xff] %vm1347, %v1323
        %1357 = vst.msk [vmem:[%s136 + $0x48] sm:$0xff] %vm1347, %v1324
        %1358 = vst.msk [vmem:[%s136 + $0x50] sm:$0xff] %vm1347, %v1325
        %1359 = vst.msk [vmem:[%s136 + $0x58] sm:$0xff] %vm1347, %v1326
        %1360 = vst.msk [vmem:[%s136 + $0x60] sm:$0xff] %vm1347, %v1327
        %1361 = vst.msk [vmem:[%s136 + $0x68] sm:$0xff] %vm1347, %v1328
        %1362 = vst.msk [vmem:[%s136 + $0x70] sm:$0xff] %vm1347, %v1329
        %1363 = vst.msk [vmem:[%s136 + $0x78] sm:$0xff] %vm1347, %v1330
        %1364 = vst.msk [vmem:[%s136 + $0x80] sm:$0xff] %vm1347, %v1331
        %1365 = vst.msk [vmem:[%s136 + $0x88] sm:$0xff] %vm1347, %v1332
        %1366 = vst.msk [vmem:[%s136 + $0x90] sm:$0xff] %vm1347, %v1333
        %1367 = vst.msk [vmem:[%s136 + $0x98] sm:$0xff] %vm1347, %v1334
        %1368 = vst.msk [vmem:[%s136 + $0xa0] sm:$0xff] %vm1347, %v1335
        %1369 = vst.msk [vmem:[%s136 + $0xa8] sm:$0xff] %vm1347, %v1336
        %1370 = vst.msk [vmem:[%s136 + $0xb0] sm:$0xff] %vm1347, %v1337
        %1371 = vst.msk [vmem:[%s136 + $0xb8] sm:$0xff] %vm1347, %v1338
        %1372 = vst.msk [vmem:[%s136 + $0xc0] sm:$0xff] %vm1347, %v1339
        %1373 = vst.msk [vmem:[%s136 + $0xc8] sm:$0xff] %vm1347, %v1340
        %1374 = vst.msk [vmem:[%s136 + $0xd0] sm:$0xff] %vm1347, %v1341
        %1375 = vst.msk [vmem:[%s136 + $0xd8] sm:$0xff] %vm1347, %v1342
        %1376 = vst.msk [vmem:[%s136 + $0xe0] sm:$0xff] %vm1347, %v1343
        %1377 = vst.msk [vmem:[%s136 + $0xe8] sm:$0xff] %vm1347, %v1344
        %1378 = vst.msk [vmem:[%s136 + $0xf0] sm:$0xff] %vm1347, %v1345
        %1379 = vst.msk [vmem:[%s136 + $0xf8] sm:$0xff] %vm1347, %v1346
        %s1380 = sand.u32 %s71, 1
        %s1381 = scalar_lea.sflag [#allocation3], %s1380
        %s1382 = sand.u32 %s71, 1
        %s1383 = smul.addr %s1382, 256
        %s1384 = scalar_lea.vmem [#allocation2], %s1383
        // Predicated region
        $region29: #{_conv3x3_nobias.1} parent=27 // pred_check
          %p1385 = pneg %p81
        $region30: #{_conv3x3_nobias.1} parent=27 // pred_check_branch
          %1387 = sbr.rel (%p1385) target = $region32
        $region31: #{_conv3x3_nobias.1} parent=27 // pred_region
          %s1389 = ssub.s32 4096, 4096
          %1390 = vsyncadd %s1381, %s1389
          %s1391 = smul.addr %s16, 32
          %s1392 = smul.addr %s1391, 128
          %s1393 = scalar_lea.hbm %s2, %s1392
          %s1394 = sshll.u32 %s1384, 4
          %s1395 = int_to_ptr.vmem [resolvable:$true] %s1394
          %1400 = dma.vmem_to_hbm [thread:$0]  %s1395, 4096, %s1393, %s1381, 128, 128, 8
        $region32: #{_conv3x3_nobias.1} parent=27 // pred_fallthru
          _
      $region28: #{_conv3x3_nobias.1} parent=5 // pred_fallthru
        _
      %p1401 = scmp.le.s32.totalorder 2, %s11
      // Predicated region
      $region33: #{_conv3x3_nobias.1} parent=5 // pred_check
        %p1402 = pneg %p1401
      $region34: #{_conv3x3_nobias.1} parent=5 // pred_check_branch
        %1404 = sbr.rel (%p1402) target = $region36
      $region35: #{_conv3x3_nobias.1} parent=5 // pred_region
        %s1405 = ssub.s32 %s11, 2
        // Predicated region
        $region37: #{_conv3x3_nobias.1} parent=35 // pred_check
          %p1406 = pneg %p87
        $region38: #{_conv3x3_nobias.1} parent=35 // pred_check_branch
          %1408 = sbr.rel (%p1406) target = $region40
        $region39: #{_conv3x3_nobias.1} parent=35 // pred_region
          %s1409 = sand.u32 %s72, 1
          %s1410 = scalar_lea.sflag [#allocation3], %s1409
          %s1411 = sand.u32 %s72, 1
          %s1412 = smul.addr %s1411, 256
          %s1413 = scalar_lea.vmem [#allocation2], %s1412
          %1414 = dma.done %s1410, 4096
        $region40: #{_conv3x3_nobias.1} parent=35 // pred_fallthru
          _
      $region36: #{_conv3x3_nobias.1} parent=5 // pred_fallthru
        _
    $region6: #{_conv3x3_nobias.1} parent=1 // loop_footer
      %s15 = sadd.s32 1, %s11
    $region7: #{_conv3x3_nobias.1} parent=1 // loop_footer_branch
      %10 = sbr.rel target = $region3
    $region8: #{_conv3x3_nobias.1} parent=1 // loop_exit
      _
    %1415 = vsyncpa [#allocation3], 1
    %s1416 = scalar_lea.sflag [#allocation3], 1
    %1417 = vsyncpa %s1416, 1

</llo_original>
